<compile_context>
chip_gen: v5e
topology: v5e:2x2
jax: 0.10.0
libtpu: 0.0.40
codegen_flags: <defaults>
</compile_context>

<pallas_src>
import functools

import numpy as np
import jax
import jax.numpy as jnp
from jax import lax
from jax.experimental import pallas as pl
from jax.experimental.pallas import tpu as pltpu

_EPS = 1e-5
_LANE = 128
_N_SUMS = 4            # sq_box, bce_obj, bce_noobj, bce_cls
OBJ_SCALE = 1.0
NOOBJ_SCALE = 5.0
IOU_THRES = 0.5


# ----------------------------------------------------------------------------
# Pallas kernel: masked loss partial sums for one YOLO layer
# ----------------------------------------------------------------------------
def _loss_kernel(tbl_ref, pred_ref, tgt_ref, aux_ref, out_ref,
                 acc_box, acc_bobj, acc_bnoobj, acc_bcls,
                 *, nx, ny, na, nc, inv_aw, inv_ah, ts):
    p = pl.program_id(0)               # TensorCore split ("parallel")
    k = pl.program_id(1)               # row-block walk ("arbitrary")
    ncs = pl.num_programs(0)
    nk = pl.num_programs(1)

    accs = (acc_box, acc_bobj, acc_bnoobj, acc_bcls)

    @pl.when(k == 0)
    def _init():
        for acc in accs:
            acc[...] = jnp.zeros_like(acc)

    nxf, nyf, naf = float(nx), float(ny), float(na)
    inv_nx, inv_ny, inv_na = 1.0 / nx, 1.0 / ny, 1.0 / na

    obj = aux_ref[0].astype(jnp.float32)      # padded cells carry obj=noobj=0
    noobj = aux_ref[1].astype(jnp.float32)
    cls_idx = aux_ref[2].astype(jnp.float32)  # class index (-1 where no GT)

    # --- exact offset-grid / anchor-index reconstruction --------------------
    # The remainders of this block's first flattened cell index are read from
    # the scalar-prefetched SMEM table (exact integers).  The in-block values
    # stay below 2^17 so the f32 vector math below is exact; the +0.5 keeps the
    # reciprocal-multiply safely away from integer boundaries.
    b = k * ncs + p
    br1 = tbl_ref[3 * b]          # base %  nx
    br2 = tbl_ref[3 * b + 1]      # (base // nx) % ny
    br3 = tbl_ref[3 * b + 2]      # (base // (nx*ny)) % na

    r = (lax.broadcasted_iota(jnp.int32, (ts, _LANE), 0) * _LANE
         + lax.broadcasted_iota(jnp.int32, (ts, _LANE), 1))
    u = (br1 + r).astype(jnp.float32)
    uq = jnp.floor((u + 0.5) * inv_nx)
    ogx = u - uq * nxf                              # grid x (column) index
    v = br2.astype(jnp.float32) + uq
    vq = jnp.floor((v + 0.5) * inv_ny)
    ogy = v - vq * nyf                              # grid y (row) index
    w = br3.astype(jnp.float32) + vq
    a_f = w - jnp.floor((w + 0.5) * inv_na) * naf   # anchor index

    r_aw = jnp.full((ts, _LANE), inv_aw[0], jnp.float32)
    r_ah = jnp.full((ts, _LANE), inv_ah[0], jnp.float32)
    for a in range(1, na):
        sel = a_f == float(a)
        r_aw = jnp.where(sel, inv_aw[a], r_aw)
        r_ah = jnp.where(sel, inv_ah[a], r_ah)

    # --- inverse transforms of predictions (_pr_outs) ------------------------
    px2 = jnp.clip(pred_ref[0] * nxf - ogx, _EPS, 1.0 - _EPS)
    px3 = jnp.log(px2 * pl.reciprocal(1.0 - px2, approx=True) + _EPS)
    py2 = jnp.clip(pred_ref[1] * nyf - ogy, _EPS, 1.0 - _EPS)
    py3 = jnp.log(py2 * pl.reciprocal(1.0 - py2, approx=True) + _EPS)
    pw3 = jnp.log(jnp.maximum(pred_ref[2] * nxf * r_aw, _EPS))
    ph3 = jnp.log(jnp.maximum(pred_ref[3] * nyf * r_ah, _EPS))

    sq = ((px3 - tgt_ref[0]) ** 2 + (py3 - tgt_ref[1]) ** 2
          + (pw3 - tgt_ref[2]) ** 2 + (ph3 - tgt_ref[3]) ** 2)
    acc_box[...] += obj * sq

    # --- objectness BCE (obj/noobj are 0/1 and disjoint; gt_conf == obj) -----
    pconf = pred_ref[4]
    acc_bobj[...] += obj * jnp.minimum(-jnp.log(pconf), 100.0)
    acc_bnoobj[...] += noobj * jnp.minimum(-jnp.log(1.0 - pconf), 100.0)

    # --- class BCE: one-hot rebuilt from the class-index channel -------------
    def cls_term(pc, tc):
        lp = jnp.maximum(jnp.log(pc), -100.0)
        ln = jnp.maximum(jnp.log(1.0 - pc), -100.0)
        # -(tc*lp + (1-tc)*ln)  ==  tc*(ln - lp) - ln
        return tc * (ln - lp) - ln

    if nc <= 8:
        cls_bce = jnp.zeros((ts, _LANE), jnp.float32)
        for c in range(nc):
            tc = (cls_idx == float(c)).astype(jnp.float32)
            cls_bce += cls_term(pred_ref[5 + c], tc)
    else:
        def body(c, carry):
            b0, b1 = carry
            c0 = 2 * c
            tc0 = (cls_idx == c0.astype(jnp.float32)).astype(jnp.float32)
            b0 = b0 + cls_term(pred_ref[5 + c0], tc0)
            tc1 = (cls_idx == (c0 + 1).astype(jnp.float32)).astype(jnp.float32)
            b1 = b1 + cls_term(pred_ref[6 + c0], tc1)
            return b0, b1

        z = jnp.zeros((ts, _LANE), jnp.float32)
        b0, b1 = lax.fori_loop(0, nc // 2, body, (z, z), unroll=4)
        cls_bce = b0 + b1
        if nc % 2:
            tc = (cls_idx == float(nc - 1)).astype(jnp.float32)
            cls_bce = cls_bce + cls_term(pred_ref[4 + nc], tc)
    acc_bcls[...] += obj * cls_bce

    # --- epilogue: sublane-reduce once; the lane sum finishes in the wrapper -
    @pl.when(k == nk - 1)
    def _flush():
        sub = lax.broadcasted_iota(jnp.int32, (8, _LANE), 0)
        slab = jnp.zeros((8, _LANE), jnp.float32)
        for j, acc in enumerate(accs):
            slab = jnp.where(sub == j,
                             jnp.sum(acc[...], axis=0, keepdims=True), slab)
        out_ref[0] = slab


# ----------------------------------------------------------------------------
# Generation-aware launch / tiling configuration
# ----------------------------------------------------------------------------
def _tpu_config():
    """(core_split, vmem_tile_budget, vmem_limit_bytes) for the local chip."""
    kind = ""
    try:
        kind = jax.devices()[0].device_kind.lower()
    except Exception:
        pass
    two_core = any(s in kind for s in ("v7", "7x", "v4", "v5p"))
    n_cores = 2 if two_core else 1
    vmem_phys = 128 * 1024 * 1024
    try:
        vmem_phys = int(pltpu.get_tpu_info().vmem_capacity_bytes)
    except Exception:
        if "v7" in kind or "7x" in kind:
            vmem_phys = 64 * 1024 * 1024
    if vmem_phys <= 96 * 1024 * 1024:          # e.g. v7x: 64 MiB per TC
        return n_cores, 20 * 1024 * 1024, 40 * 1024 * 1024
    return n_cores, 48 * 1024 * 1024, 100 * 1024 * 1024   # v5e/v6e: 128 MiB


def _choose_tile(m, nc, n_cores, vmem_budget):
    """Sublane depth TS (multiple of 16, <=512) and inner steps per core."""
    bytes_per_cell = 4 * (5 + nc) + 4 * 4 + 2 * 3        # f32 pred/tgt, bf16 aux
    per_ts = _LANE * (2 * bytes_per_cell + _N_SUMS * 4)  # dbl-buffered in + accs
    ts_cap = max(16, min(512, (vmem_budget // per_ts) // 16 * 16))
    rows_per_core = -(-m // (n_cores * _LANE))
    ts_need = max(16, -(-rows_per_core // 16) * 16)
    ts = min(ts_cap, ts_need)
    inner_n = -(-m // (n_cores * ts * _LANE))
    return ts, inner_n


def _block_table(n_blocks, ts, nx, ny, na):
    """Per-block exact remainders of the block's first flattened cell index."""
    base = np.arange(n_blocks, dtype=np.int64) * (ts * _LANE)
    q1, br1 = base // nx, base % nx
    q2, br2 = q1 // ny, q1 % ny
    br3 = q2 % na
    return jnp.asarray(np.stack([br1, br2, br3], axis=1).reshape(-1), jnp.int32)


def layer_loss_sums(pred_s, tgt_s, aux_s, tbl, *, nx, ny, na, nc, anchors,
                    ts, inner_n, n_cores, vmem_limit):
    inv_aw = tuple(float(1.0 / a[0]) for a in anchors)
    inv_ah = tuple(float(1.0 / a[1]) for a in anchors)
    kern = functools.partial(_loss_kernel, nx=nx, ny=ny, na=na, nc=nc,
                             inv_aw=inv_aw, inv_ah=inv_ah, ts=ts)
    # Interleaved block -> core mapping so every core sees real (non-pad) rows.
    idx = lambda p, k, tbl_ref: (0, k * n_cores + p, 0)
    m_pad = n_cores * inner_n * ts * _LANE
    bytes_accessed = int(pred_s.size * 4 + tgt_s.size * 4 + aux_s.size * 2
                         + tbl.size * 4 + n_cores * 8 * _LANE * 4)
    cost = pl.CostEstimate(flops=int(m_pad * (60 + 8 * nc)),
                           transcendentals=int(m_pad * (8 + 2 * nc)),
                           bytes_accessed=bytes_accessed)
    out = pl.pallas_call(
        kern,
        out_shape=jax.ShapeDtypeStruct((n_cores, 8, _LANE), jnp.float32),
        grid_spec=pltpu.PrefetchScalarGridSpec(
            num_scalar_prefetch=1,
            grid=(n_cores, inner_n),
            in_specs=[
                pl.BlockSpec((5 + nc, ts, _LANE), idx),
                pl.BlockSpec((4, ts, _LANE), idx),
                pl.BlockSpec((3, ts, _LANE), idx),
            ],
            out_specs=pl.BlockSpec((1, 8, _LANE), lambda p, k, tbl_ref: (p, 0, 0)),
            scratch_shapes=[pltpu.VMEM((ts, _LANE), jnp.float32)] * _N_SUMS,
        ),
        compiler_params=pltpu.CompilerParams(
            dimension_semantics=("parallel", "arbitrary"),
            vmem_limit_bytes=vmem_limit),
        cost_estimate=cost,
    )(tbl, pred_s, tgt_s, aux_s)
    # Finish the reduction: sum over cores and over the 128 lanes.
    return jnp.sum(out, axis=(0, 2))[:_N_SUMS]


# ----------------------------------------------------------------------------
# Plain-JAX glue: YOLO layer parameters and target building (_gt_outs)
# ----------------------------------------------------------------------------
class YoloLayer:
    def __init__(self, na, ny, nx, nc, anchors):
        self.na, self.ny, self.nx, self.nc = na, ny, nx, nc
        self.anchors = tuple((float(w), float(h)) for w, h in anchors)
        self.ag = jnp.asarray(anchors, jnp.float32)              # (na, 2)
        gy, gx = jnp.meshgrid(
            jnp.arange(ny, dtype=jnp.float32),
            jnp.arange(nx, dtype=jnp.float32),
            indexing="ij",
        )
        self.og = jnp.stack([gx, gy], axis=-1)                    # (ny, nx, 2)


def build_targets(gt_labels, layer, bs, iou_thres):
    na, ny, nx, nc = layer.na, layer.ny, layer.nx, layer.nc
    anchors = layer.ag
    n = gt_labels.shape[0]

    img_id = gt_labels[:, 1].astype(jnp.int32)
    cls_id = gt_labels[:, 2].astype(jnp.int32)
    gx = gt_labels[:, 3] * nx
    gy = gt_labels[:, 4] * ny
    gw = gt_labels[:, 5] * nx
    gh = gt_labels[:, 6] * ny
    gi = gx.astype(jnp.int32)
    gj = gy.astype(jnp.int32)

    aw = anchors[:, 0][:, None]
    ah = anchors[:, 1][:, None]
    inter = jnp.minimum(aw, gw[None, :]) * jnp.minimum(ah, gh[None, :])
    union = aw * ah + gw[None, :] * gh[None, :] - inter + 1e-16
    ious = (inter / union).T                                      # (n, na)
    best_a = jnp.argmax(ious, axis=1)

    zeros4 = jnp.zeros((bs, na, ny, nx), jnp.float32)
    obj = zeros4.at[img_id, best_a, gj, gi].set(1.0)
    noobj = jnp.ones((bs, na, ny, nx), jnp.float32).at[img_id, best_a, gj, gi].set(0.0)

    anc_idx = jnp.broadcast_to(jnp.arange(na, dtype=jnp.int32)[None, :], (n, na))
    bi = jnp.broadcast_to(img_id[:, None], (n, na))
    bj = jnp.broadcast_to(gj[:, None], (n, na))
    bgi = jnp.broadcast_to(gi[:, None], (n, na))
    noobj = noobj.at[bi, anc_idx, bj, bgi].min(jnp.where(ious > iou_thres, 0.0, 1.0))

    fx = gx - jnp.floor(gx)
    fx = jnp.where(fx == 0.0, fx + 1e-5, fx)
    tx = jnp.log(fx / (1.0 - fx))
    fy = gy - jnp.floor(gy)
    fy = jnp.where(fy == 0.0, fy + 1e-5, fy)
    ty = jnp.log(fy / (1.0 - fy))
    tw = jnp.log(gw / anchors[best_a, 0] + 1e-5)
    th = jnp.log(gh / anchors[best_a, 1] + 1e-5)

    gt_x = zeros4.at[img_id, best_a, gj, gi].set(tx)
    gt_y = zeros4.at[img_id, best_a, gj, gi].set(ty)
    gt_w = zeros4.at[img_id, best_a, gj, gi].set(tw)
    gt_h = zeros4.at[img_id, best_a, gj, gi].set(th)
    # Class index per cell (-1 where no GT box was assigned).  The kernel /
    # reference rebuild the one-hot from this; it only matters where obj == 1.
    cls_map = jnp.full((bs, na, ny, nx), -1.0, jnp.float32).at[
        img_id, best_a, gj, gi].set(cls_id.astype(jnp.float32))
    return obj, noobj, gt_x, gt_y, gt_w, gt_h, cls_map


def _pack_layer(pr, obj, noobj, gtx, gty, gtw, gth, cls_map, nc, m, m_pad):
    # TODO(synk): emitting the detection head channel-major (and bf16 class
    # probabilities / raw logits) would remove this transpose round trip, the
    # single biggest remaining HBM cost of the loss.
    r = m_pad // _LANE

    def pack(cm, dtype):                         # (C, m) -> (C, r, 128)
        c = cm.shape[0]
        xp = jnp.pad(cm, ((0, 0), (0, m_pad - m)))
        return xp.reshape(c, r, _LANE).astype(dtype)

    pred_cm = jnp.moveaxis(pr.reshape(m, 5 + nc).astype(jnp.float32), 1, 0)
    tgt_cm = jnp.stack([gtx.reshape(m), gty.reshape(m),
                        gtw.reshape(m), gth.reshape(m)], axis=0).astype(jnp.float32)
    aux_cm = jnp.stack([obj.reshape(m), noobj.reshape(m), cls_map.reshape(m)],
                       axis=0)
    return (pack(pred_cm, jnp.float32), pack(tgt_cm, jnp.float32),
            pack(aux_cm, jnp.bfloat16))


def yolov3_loss_pallas(pr_outs, gt_labels, layers):
    # TODO(synk): fuse all layers into a single pallas_call (per-block layer id
    # + per-layer constants in the SMEM prefetch table) to amortize launch and
    # pipeline-ramp cost of the small heads.
    n_cores, vmem_budget, vmem_limit = _tpu_config()
    total = jnp.float32(0.0)
    for pr, layer in zip(pr_outs, layers):
        bs = pr.shape[0]
        na, ny, nx, nc = layer.na, layer.ny, layer.nx, layer.nc
        obj, noobj, gtx, gty, gtw, gth, cls_map = build_targets(
            gt_labels, layer, bs, IOU_THRES)
        cnt_obj = jnp.sum(obj)            # fuses with build_targets under jit
        cnt_noobj = jnp.sum(noobj)
        m = bs * na * ny * nx
        ts, inner_n = _choose_tile(m, nc, n_cores, vmem_budget)
        m_pad = n_cores * inner_n * ts * _LANE
        pred_s, tgt_s, aux_s = _pack_layer(pr, obj, noobj, gtx, gty, gtw, gth,
                                           cls_map, nc, m, m_pad)
        tbl = _block_table(n_cores * inner_n, ts, nx, ny, na)
        s = layer_loss_sums(pred_s, tgt_s, aux_s, tbl,
                            nx=nx, ny=ny, na=na, nc=nc, anchors=layer.anchors,
                            ts=ts, inner_n=inner_n, n_cores=n_cores,
                            vmem_limit=vmem_limit)
        sq_box, bce_obj, bce_noobj, bce_cls = s[0], s[1], s[2], s[3]
        # NOTE: like the PyTorch reference, zero GT boxes => cnt_obj == 0 => NaN.
        l_box = sq_box / cnt_obj
        l_conf = OBJ_SCALE * bce_obj / cnt_obj + NOOBJ_SCALE * bce_noobj / cnt_noobj
        l_cls = bce_cls / (cnt_obj * nc)
        total = total + l_box + l_conf + l_cls
    return total


# ----------------------------------------------------------------------------
# Pure-JAX reference (same math, no Pallas) for a sanity check
# ----------------------------------------------------------------------------
def yolov3_loss_reference(pr_outs, gt_labels, layers):
    total = jnp.float32(0.0)
    for pr, layer in zip(pr_outs, layers):
        bs = pr.shape[0]
        na, ny, nx, nc = layer.na, layer.ny, layer.nx, layer.nc
        obj, noobj, gtx, gty, gtw, gth, cls_map = build_targets(
            gt_labels, layer, bs, IOU_THRES)
        gtc = (cls_map[..., None]
               == jnp.arange(nc, dtype=jnp.float32)).astype(jnp.float32)
        og = layer.og[None, None]
        ag = layer.ag[None, :, None, None, :]

        px = pr[..., 0] * nx
        px3 = jnp.log(jnp.clip(px - og[..., 0], _EPS, 1 - _EPS)
                      / (1 - jnp.clip(px - og[..., 0], _EPS, 1 - _EPS)) + _EPS)
        py = pr[..., 1] * ny
        py3 = jnp.log(jnp.clip(py - og[..., 1], _EPS, 1 - _EPS)
                      / (1 - jnp.clip(py - og[..., 1], _EPS, 1 - _EPS)) + _EPS)
        pw3 = jnp.log(jnp.maximum(pr[..., 2] * nx / ag[..., 0], _EPS))
        ph3 = jnp.log(jnp.maximum(pr[..., 3] * ny / ag[..., 1], _EPS))

        def bce(p, t):
            return -(t * jnp.maximum(jnp.log(p), -100.0)
                     + (1 - t) * jnp.maximum(jnp.log(1 - p), -100.0))

        cnt_obj = jnp.sum(obj)
        cnt_noobj = jnp.sum(noobj)
        l_box = (jnp.sum(obj * (px3 - gtx) ** 2) + jnp.sum(obj * (py3 - gty) ** 2)
                 + jnp.sum(obj * (pw3 - gtw) ** 2)
                 + jnp.sum(obj * (ph3 - gth) ** 2)) / cnt_obj
        l_conf = (OBJ_SCALE * jnp.sum(obj * bce(pr[..., 4], obj)) / cnt_obj
                  + NOOBJ_SCALE * jnp.sum(noobj * bce(pr[..., 4], obj)) / cnt_noobj)
        l_cls = jnp.sum(obj[..., None] * bce(pr[..., 5:], gtc)) / (cnt_obj * nc)
        total = total + l_box + l_conf + l_cls
    return total


# ----------------------------------------------------------------------------
# Deterministic synthetic setup
# ----------------------------------------------------------------------------
def make_predictions(key, layer, bs):
    na, ny, nx, nc = layer.na, layer.ny, layer.nx, layer.nc
    r = jax.random.normal(key, (bs, na, ny, nx, 5 + nc), jnp.float32)
    gx = layer.og[None, None, ..., 0]
    gy = layer.og[None, None, ..., 1]
    aw = layer.ag[None, :, None, None, 0]
    ah = layer.ag[None, :, None, None, 1]
    px = (jax.nn.sigmoid(r[..., 0]) + gx) / nx
    py = (jax.nn.sigmoid(r[..., 1]) + gy) / ny
    pw = aw * jnp.exp(0.3 * r[..., 2]) / nx
    ph = ah * jnp.exp(0.3 * r[..., 3]) / ny
    pconf = jax.nn.sigmoid(r[..., 4])
    pcls = jax.nn.sigmoid(r[..., 5:])
    return jnp.concatenate(
        [px[..., None], py[..., None], pw[..., None], ph[..., None],
         pconf[..., None], pcls],
        axis=-1,
    )


if __name__ == "__main__":
    key = jax.random.PRNGKey(0)
    k_pr0, k_pr1, k_xy, k_wh = jax.random.split(key, 4)

    bs, na, nc = 2, 3, 4
    layers = [
        YoloLayer(na=na, ny=8, nx=8, nc=nc,
                  anchors=[[1.5, 2.0], [3.0, 3.5], [5.0, 4.5]]),
        YoloLayer(na=na, ny=4, nx=4, nc=nc,
                  anchors=[[1.0, 1.2], [1.8, 2.2], [2.5, 3.0]]),
    ]

    pr_outs = [
        make_predictions(k_pr0, layers[0], bs),   # (2, 3, 8, 8, 9)
        make_predictions(k_pr1, layers[1], bs),   # (2, 3, 4, 4, 9)
    ]

    n_gt = 6
    xy = jax.random.uniform(k_xy, (n_gt, 2), minval=0.05, maxval=0.95)
    wh = jax.random.uniform(k_wh, (n_gt, 2), minval=0.08, maxval=0.45)
    img_id = jnp.array([0, 0, 0, 1, 1, 1], jnp.float32)[:, None]
    cls_id = jnp.array([0, 1, 2, 3, 1, 0], jnp.float32)[:, None]
    gt_labels = jnp.concatenate(
        [jnp.zeros((n_gt, 1), jnp.float32), img_id, cls_id, xy, wh], axis=1
    )  # (6, 7): [_, img_id, cls_id, x, y, w, h]

    loss_fn = jax.jit(lambda po, gl: yolov3_loss_pallas(po, gl, layers))
    ref_fn = jax.jit(lambda po, gl: yolov3_loss_reference(po, gl, layers))

    loss = jax.block_until_ready(loss_fn(pr_outs, gt_labels))
    ref = jax.block_until_ready(ref_fn(pr_outs, gt_labels))

    np.testing.assert_allclose(np.asarray(loss), np.asarray(ref),
                               rtol=2e-3, atol=1e-3)

    print("KERNEL_OK")
</pallas_src>

<mosaic_0001>
module attributes {stable_mosaic.version = 11 : i64} {
  func.func @_loss_kernel(%arg0: i32, %arg1: i32, %arg2: memref<3xi32, #tpu.memory_space<smem>>, %arg3: memref<9x16x128xf32, #tpu.memory_space<vmem>>, %arg4: memref<4x16x128xf32, #tpu.memory_space<vmem>>, %arg5: memref<3x16x128xbf16, #tpu.memory_space<vmem>>, %arg6: memref<1x8x128xf32, #tpu.memory_space<vmem>>, %arg7: memref<16x128xf32, #tpu.memory_space<vmem>>, %arg8: memref<16x128xf32, #tpu.memory_space<vmem>>, %arg9: memref<16x128xf32, #tpu.memory_space<vmem>>, %arg10: memref<16x128xf32, #tpu.memory_space<vmem>>) attributes {dimension_semantics = [#tpu.dimension_semantics<parallel>, #tpu.dimension_semantics<arbitrary>], iteration_bounds = array<i64: 1, 1>, scalar_prefetch = 1 : i64, scratch_operands = 4 : i64, tpu.core_type = #tpu.core_type<tc>, window_params = [{transform_indices = @transform_0, window_bounds = array<i64: 9, 16, 128>}, {transform_indices = @transform_1, window_bounds = array<i64: 4, 16, 128>}, {transform_indices = @transform_2, window_bounds = array<i64: 3, 16, 128>}, {transform_indices = @transform_3, window_bounds = array<i64: 1, 8, 128>}]} {
    %c0_i32 = arith.constant 0 : i32
    %0 = arith.cmpi eq, %arg1, %c0_i32 : i32
    %1 = arith.extui %0 : i1 to i32
    %c0_i32_0 = arith.constant 0 : i32
    %2 = arith.cmpi ne, %1, %c0_i32_0 : i32
    scf.if %2 {
      %cst_113 = arith.constant 0.000000e+00 : f32
      %250 = vector.broadcast %cst_113 : f32 to vector<16x128xf32>
      %c0_114 = arith.constant 0 : index
      %c0_115 = arith.constant 0 : index
      %251 = vector.load %arg7[%c0_114, %c0_115] : memref<16x128xf32, #tpu.memory_space<vmem>>, vector<16x128xf32>
      tpu.vector_store %arg7[%c0_114, %c0_115], %250 {strides = array<i32>} : memref<16x128xf32, #tpu.memory_space<vmem>>, vector<16x128xf32>,
      %cst_116 = arith.constant 0.000000e+00 : f32
      %252 = vector.broadcast %cst_116 : f32 to vector<16x128xf32>
      %c0_117 = arith.constant 0 : index
      %c0_118 = arith.constant 0 : index
      %253 = vector.load %arg8[%c0_117, %c0_118] : memref<16x128xf32, #tpu.memory_space<vmem>>, vector<16x128xf32>
      tpu.vector_store %arg8[%c0_117, %c0_118], %252 {strides = array<i32>} : memref<16x128xf32, #tpu.memory_space<vmem>>, vector<16x128xf32>,
      %cst_119 = arith.constant 0.000000e+00 : f32
      %254 = vector.broadcast %cst_119 : f32 to vector<16x128xf32>
      %c0_120 = arith.constant 0 : index
      %c0_121 = arith.constant 0 : index
      %255 = vector.load %arg9[%c0_120, %c0_121] : memref<16x128xf32, #tpu.memory_space<vmem>>, vector<16x128xf32>
      tpu.vector_store %arg9[%c0_120, %c0_121], %254 {strides = array<i32>} : memref<16x128xf32, #tpu.memory_space<vmem>>, vector<16x128xf32>,
      %cst_122 = arith.constant 0.000000e+00 : f32
      %256 = vector.broadcast %cst_122 : f32 to vector<16x128xf32>
      %c0_123 = arith.constant 0 : index
      %c0_124 = arith.constant 0 : index
      %257 = vector.load %arg10[%c0_123, %c0_124] : memref<16x128xf32, #tpu.memory_space<vmem>>, vector<16x128xf32>
      tpu.vector_store %arg10[%c0_123, %c0_124], %256 {strides = array<i32>} : memref<16x128xf32, #tpu.memory_space<vmem>>, vector<16x128xf32>,
    } else {
    }
    %c0 = arith.constant 0 : index
    %c0_1 = arith.constant 0 : index
    %c0_2 = arith.constant 0 : index
    %3 = vector.load %arg5[%c0, %c0_1, %c0_2] : memref<3x16x128xbf16, #tpu.memory_space<vmem>>, vector<1x16x128xbf16>
    %4 = vector.shape_cast %3 : vector<1x16x128xbf16> to vector<16x128xbf16>
    %5 = arith.extf %4 : vector<16x128xbf16> to vector<16x128xf32>
    %c1 = arith.constant 1 : index
    %c0_3 = arith.constant 0 : index
    %c0_4 = arith.constant 0 : index
    %6 = vector.load %arg5[%c1, %c0_3, %c0_4] : memref<3x16x128xbf16, #tpu.memory_space<vmem>>, vector<1x16x128xbf16>
    %7 = vector.shape_cast %6 : vector<1x16x128xbf16> to vector<16x128xbf16>
    %8 = arith.extf %7 : vector<16x128xbf16> to vector<16x128xf32>
    %c2 = arith.constant 2 : index
    %c0_5 = arith.constant 0 : index
    %c0_6 = arith.constant 0 : index
    %9 = vector.load %arg5[%c2, %c0_5, %c0_6] : memref<3x16x128xbf16, #tpu.memory_space<vmem>>, vector<1x16x128xbf16>
    %10 = vector.shape_cast %9 : vector<1x16x128xbf16> to vector<16x128xbf16>
    %11 = arith.extf %10 : vector<16x128xbf16> to vector<16x128xf32>
    %c1_i32 = arith.constant 1 : i32
    %12 = arith.muli %arg1, %c1_i32 : i32
    %13 = arith.addi %12, %arg0 : i32
    %c3_i32 = arith.constant 3 : i32
    %14 = arith.muli %c3_i32, %13 : i32
    %15 = arith.index_cast %14 : i32 to index
    %16 = memref.load %arg2[%15] : memref<3xi32, #tpu.memory_space<smem>>
    %c3_i32_7 = arith.constant 3 : i32
    %17 = arith.muli %c3_i32_7, %13 : i32
    %c1_i32_8 = arith.constant 1 : i32
    %18 = arith.addi %17, %c1_i32_8 : i32
    %19 = arith.index_cast %18 : i32 to index
    %20 = memref.load %arg2[%19] : memref<3xi32, #tpu.memory_space<smem>>
    %c3_i32_9 = arith.constant 3 : i32
    %21 = arith.muli %c3_i32_9, %13 : i32
    %c2_i32 = arith.constant 2 : i32
    %22 = arith.addi %21, %c2_i32 : i32
    %23 = arith.index_cast %22 : i32 to index
    %24 = memref.load %arg2[%23] : memref<3xi32, #tpu.memory_space<smem>>
    %25 = tpu.iota {dimensions = array<i32: 0>} : vector<16x128xi32>
    %c128_i32 = arith.constant 128 : i32
    %26 = vector.broadcast %c128_i32 : i32 to vector<16x128xi32>
    %27 = arith.muli %25, %26 : vector<16x128xi32>
    %28 = tpu.iota {dimensions = array<i32: 1>} : vector<16x128xi32>
    %29 = arith.addi %27, %28 : vector<16x128xi32>
    %30 = vector.broadcast %16 : i32 to vector<16x128xi32>
    %31 = arith.addi %30, %29 : vector<16x128xi32>
    %32 = arith.sitofp %31 : vector<16x128xi32> to vector<16x128xf32>
    %cst = arith.constant 5.000000e-01 : f32
    %33 = vector.broadcast %cst : f32 to vector<16x128xf32>
    %34 = arith.addf %32, %33 : vector<16x128xf32>
    %cst_10 = arith.constant 1.250000e-01 : f32
    %35 = vector.broadcast %cst_10 : f32 to vector<16x128xf32>
    %36 = arith.mulf %34, %35 : vector<16x128xf32>
    %37 = math.floor %36 : vector<16x128xf32>
    %cst_11 = arith.constant 8.000000e+00 : f32
    %38 = vector.broadcast %cst_11 : f32 to vector<16x128xf32>
    %39 = arith.mulf %37, %38 : vector<16x128xf32>
    %40 = arith.subf %32, %39 : vector<16x128xf32>
    %41 = arith.sitofp %20 : i32 to f32
    %42 = vector.broadcast %41 : f32 to vector<16x128xf32>
    %43 = arith.addf %42, %37 : vector<16x128xf32>
    %cst_12 = arith.constant 5.000000e-01 : f32
    %44 = vector.broadcast %cst_12 : f32 to vector<16x128xf32>
    %45 = arith.addf %43, %44 : vector<16x128xf32>
    %cst_13 = arith.constant 1.250000e-01 : f32
    %46 = vector.broadcast %cst_13 : f32 to vector<16x128xf32>
    %47 = arith.mulf %45, %46 : vector<16x128xf32>
    %48 = math.floor %47 : vector<16x128xf32>
    %cst_14 = arith.constant 8.000000e+00 : f32
    %49 = vector.broadcast %cst_14 : f32 to vector<16x128xf32>
    %50 = arith.mulf %48, %49 : vector<16x128xf32>
    %51 = arith.subf %43, %50 : vector<16x128xf32>
    %52 = arith.sitofp %24 : i32 to f32
    %53 = vector.broadcast %52 : f32 to vector<16x128xf32>
    %54 = arith.addf %53, %48 : vector<16x128xf32>
    %cst_15 = arith.constant 5.000000e-01 : f32
    %55 = vector.broadcast %cst_15 : f32 to vector<16x128xf32>
    %56 = arith.addf %54, %55 : vector<16x128xf32>
    %cst_16 = arith.constant 0.333333343 : f32
    %57 = vector.broadcast %cst_16 : f32 to vector<16x128xf32>
    %58 = arith.mulf %56, %57 : vector<16x128xf32>
    %59 = math.floor %58 : vector<16x128xf32>
    %cst_17 = arith.constant 3.000000e+00 : f32
    %60 = vector.broadcast %cst_17 : f32 to vector<16x128xf32>
    %61 = arith.mulf %59, %60 : vector<16x128xf32>
    %62 = arith.subf %54, %61 : vector<16x128xf32>
    %cst_18 = arith.constant 0.666666686 : f32
    %63 = vector.broadcast %cst_18 : f32 to vector<16x128xf32>
    %cst_19 = arith.constant 5.000000e-01 : f32
    %64 = vector.broadcast %cst_19 : f32 to vector<16x128xf32>
    %cst_20 = arith.constant 1.000000e+00 : f32
    %65 = vector.broadcast %cst_20 : f32 to vector<16x128xf32>
    %66 = arith.cmpf oeq, %62, %65 : vector<16x128xf32>
    %cst_21 = arith.constant 0.333333343 : f32
    %67 = vector.broadcast %cst_21 : f32 to vector<16x128xf32>
    %68 = arith.select %66, %67, %63 : vector<16x128xi1>, vector<16x128xf32>
    %cst_22 = arith.constant 0.285714298 : f32
    %69 = vector.broadcast %cst_22 : f32 to vector<16x128xf32>
    %70 = arith.select %66, %69, %64 : vector<16x128xi1>, vector<16x128xf32>
    %cst_23 = arith.constant 2.000000e+00 : f32
    %71 = vector.broadcast %cst_23 : f32 to vector<16x128xf32>
    %72 = arith.cmpf oeq, %62, %71 : vector<16x128xf32>
    %cst_24 = arith.constant 2.000000e-01 : f32
    %73 = vector.broadcast %cst_24 : f32 to vector<16x128xf32>
    %74 = arith.select %72, %73, %68 : vector<16x128xi1>, vector<16x128xf32>
    %cst_25 = arith.constant 0.222222224 : f32
    %75 = vector.broadcast %cst_25 : f32 to vector<16x128xf32>
    %76 = arith.select %72, %75, %70 : vector<16x128xi1>, vector<16x128xf32>
    %c0_26 = arith.constant 0 : index
    %c0_27 = arith.constant 0 : index
    %c0_28 = arith.constant 0 : index
    %77 = vector.load %arg3[%c0_26, %c0_27, %c0_28] : memref<9x16x128xf32, #tpu.memory_space<vmem>>, vector<1x16x128xf32>
    %78 = vector.shape_cast %77 : vector<1x16x128xf32> to vector<16x128xf32>
    %cst_29 = arith.constant 8.000000e+00 : f32
    %79 = vector.broadcast %cst_29 : f32 to vector<16x128xf32>
    %80 = arith.mulf %78, %79 : vector<16x128xf32>
    %81 = arith.subf %80, %40 : vector<16x128xf32>
    %cst_30 = arith.constant 9.99999974E-6 : f32
    %cst_31 = arith.constant 0.999989986 : f32
    %82 = vector.broadcast %cst_30 : f32 to vector<16x128xf32>
    %83 = arith.maximumf %82, %81 : vector<16x128xf32>
    %84 = vector.broadcast %cst_31 : f32 to vector<16x128xf32>
    %85 = arith.minimumf %84, %83 : vector<16x128xf32>
    %cst_32 = arith.constant 1.000000e+00 : f32
    %86 = vector.broadcast %cst_32 : f32 to vector<16x128xf32>
    %87 = arith.subf %86, %85 : vector<16x128xf32>
    %88 = tpu.reciprocal %87 {approx = true} : vector<16x128xf32> -> vector<16x128xf32>
    %89 = arith.mulf %85, %88 : vector<16x128xf32>
    %cst_33 = arith.constant 9.99999974E-6 : f32
    %90 = vector.broadcast %cst_33 : f32 to vector<16x128xf32>
    %91 = arith.addf %89, %90 : vector<16x128xf32>
    %92 = math.log %91 : vector<16x128xf32>
    %c1_34 = arith.constant 1 : index
    %c0_35 = arith.constant 0 : index
    %c0_36 = arith.constant 0 : index
    %93 = vector.load %arg3[%c1_34, %c0_35, %c0_36] : memref<9x16x128xf32, #tpu.memory_space<vmem>>, vector<1x16x128xf32>
    %94 = vector.shape_cast %93 : vector<1x16x128xf32> to vector<16x128xf32>
    %cst_37 = arith.constant 8.000000e+00 : f32
    %95 = vector.broadcast %cst_37 : f32 to vector<16x128xf32>
    %96 = arith.mulf %94, %95 : vector<16x128xf32>
    %97 = arith.subf %96, %51 : vector<16x128xf32>
    %cst_38 = arith.constant 9.99999974E-6 : f32
    %cst_39 = arith.constant 0.999989986 : f32
    %98 = vector.broadcast %cst_38 : f32 to vector<16x128xf32>
    %99 = arith.maximumf %98, %97 : vector<16x128xf32>
    %100 = vector.broadcast %cst_39 : f32 to vector<16x128xf32>
    %101 = arith.minimumf %100, %99 : vector<16x128xf32>
    %cst_40 = arith.constant 1.000000e+00 : f32
    %102 = vector.broadcast %cst_40 : f32 to vector<16x128xf32>
    %103 = arith.subf %102, %101 : vector<16x128xf32>
    %104 = tpu.reciprocal %103 {approx = true} : vector<16x128xf32> -> vector<16x128xf32>
    %105 = arith.mulf %101, %104 : vector<16x128xf32>
    %cst_41 = arith.constant 9.99999974E-6 : f32
    %106 = vector.broadcast %cst_41 : f32 to vector<16x128xf32>
    %107 = arith.addf %105, %106 : vector<16x128xf32>
    %108 = math.log %107 : vector<16x128xf32>
    %c2_42 = arith.constant 2 : index
    %c0_43 = arith.constant 0 : index
    %c0_44 = arith.constant 0 : index
    %109 = vector.load %arg3[%c2_42, %c0_43, %c0_44] : memref<9x16x128xf32, #tpu.memory_space<vmem>>, vector<1x16x128xf32>
    %110 = vector.shape_cast %109 : vector<1x16x128xf32> to vector<16x128xf32>
    %cst_45 = arith.constant 8.000000e+00 : f32
    %111 = vector.broadcast %cst_45 : f32 to vector<16x128xf32>
    %112 = arith.mulf %110, %111 : vector<16x128xf32>
    %113 = arith.mulf %112, %74 : vector<16x128xf32>
    %cst_46 = arith.constant 9.99999974E-6 : f32
    %114 = vector.broadcast %cst_46 : f32 to vector<16x128xf32>
    %115 = arith.maximumf %113, %114 : vector<16x128xf32>
    %116 = math.log %115 : vector<16x128xf32>
    %c3 = arith.constant 3 : index
    %c0_47 = arith.constant 0 : index
    %c0_48 = arith.constant 0 : index
    %117 = vector.load %arg3[%c3, %c0_47, %c0_48] : memref<9x16x128xf32, #tpu.memory_space<vmem>>, vector<1x16x128xf32>
    %118 = vector.shape_cast %117 : vector<1x16x128xf32> to vector<16x128xf32>
    %cst_49 = arith.constant 8.000000e+00 : f32
    %119 = vector.broadcast %cst_49 : f32 to vector<16x128xf32>
    %120 = arith.mulf %118, %119 : vector<16x128xf32>
    %121 = arith.mulf %120, %76 : vector<16x128xf32>
    %cst_50 = arith.constant 9.99999974E-6 : f32
    %122 = vector.broadcast %cst_50 : f32 to vector<16x128xf32>
    %123 = arith.maximumf %121, %122 : vector<16x128xf32>
    %124 = math.log %123 : vector<16x128xf32>
    %c0_51 = arith.constant 0 : index
    %c0_52 = arith.constant 0 : index
    %c0_53 = arith.constant 0 : index
    %125 = vector.load %arg4[%c0_51, %c0_52, %c0_53] : memref<4x16x128xf32, #tpu.memory_space<vmem>>, vector<1x16x128xf32>
    %126 = vector.shape_cast %125 : vector<1x16x128xf32> to vector<16x128xf32>
    %127 = arith.subf %92, %126 : vector<16x128xf32>
    %128 = arith.mulf %127, %127 : vector<16x128xf32>
    %c1_54 = arith.constant 1 : index
    %c0_55 = arith.constant 0 : index
    %c0_56 = arith.constant 0 : index
    %129 = vector.load %arg4[%c1_54, %c0_55, %c0_56] : memref<4x16x128xf32, #tpu.memory_space<vmem>>, vector<1x16x128xf32>
    %130 = vector.shape_cast %129 : vector<1x16x128xf32> to vector<16x128xf32>
    %131 = arith.subf %108, %130 : vector<16x128xf32>
    %132 = arith.mulf %131, %131 : vector<16x128xf32>
    %133 = arith.addf %128, %132 : vector<16x128xf32>
    %c2_57 = arith.constant 2 : index
    %c0_58 = arith.constant 0 : index
    %c0_59 = arith.constant 0 : index
    %134 = vector.load %arg4[%c2_57, %c0_58, %c0_59] : memref<4x16x128xf32, #tpu.memory_space<vmem>>, vector<1x16x128xf32>
    %135 = vector.shape_cast %134 : vector<1x16x128xf32> to vector<16x128xf32>
    %136 = arith.subf %116, %135 : vector<16x128xf32>
    %137 = arith.mulf %136, %136 : vector<16x128xf32>
    %138 = arith.addf %133, %137 : vector<16x128xf32>
    %c3_60 = arith.constant 3 : index
    %c0_61 = arith.constant 0 : index
    %c0_62 = arith.constant 0 : index
    %139 = vector.load %arg4[%c3_60, %c0_61, %c0_62] : memref<4x16x128xf32, #tpu.memory_space<vmem>>, vector<1x16x128xf32>
    %140 = vector.shape_cast %139 : vector<1x16x128xf32> to vector<16x128xf32>
    %141 = arith.subf %124, %140 : vector<16x128xf32>
    %142 = arith.mulf %141, %141 : vector<16x128xf32>
    %143 = arith.addf %138, %142 : vector<16x128xf32>
    %c0_63 = arith.constant 0 : index
    %c0_64 = arith.constant 0 : index
    %144 = vector.load %arg7[%c0_63, %c0_64] : memref<16x128xf32, #tpu.memory_space<vmem>>, vector<16x128xf32>
    %145 = arith.mulf %5, %143 : vector<16x128xf32>
    %146 = arith.addf %144, %145 : vector<16x128xf32>
    %c0_65 = arith.constant 0 : index
    %c0_66 = arith.constant 0 : index
    %147 = vector.load %arg7[%c0_65, %c0_66] : memref<16x128xf32, #tpu.memory_space<vmem>>, vector<16x128xf32>
    tpu.vector_store %arg7[%c0_65, %c0_66], %146 {strides = array<i32>} : memref<16x128xf32, #tpu.memory_space<vmem>>, vector<16x128xf32>,
    %c4 = arith.constant 4 : index
    %c0_67 = arith.constant 0 : index
    %c0_68 = arith.constant 0 : index
    %148 = vector.load %arg3[%c4, %c0_67, %c0_68] : memref<9x16x128xf32, #tpu.memory_space<vmem>>, vector<1x16x128xf32>
    %149 = vector.shape_cast %148 : vector<1x16x128xf32> to vector<16x128xf32>
    %c0_69 = arith.constant 0 : index
    %c0_70 = arith.constant 0 : index
    %150 = vector.load %arg8[%c0_69, %c0_70] : memref<16x128xf32, #tpu.memory_space<vmem>>, vector<16x128xf32>
    %151 = math.log %149 : vector<16x128xf32>
    %cst_71 = arith.constant 0.000000e+00 : f32
    %152 = vector.broadcast %cst_71 : f32 to vector<16x128xf32>
    %153 = arith.subf %152, %151 : vector<16x128xf32>
    %cst_72 = arith.constant 1.000000e+02 : f32
    %154 = vector.broadcast %cst_72 : f32 to vector<16x128xf32>
    %155 = arith.minimumf %153, %154 : vector<16x128xf32>
    %156 = arith.mulf %5, %155 : vector<16x128xf32>
    %157 = arith.addf %150, %156 : vector<16x128xf32>
    %c0_73 = arith.constant 0 : index
    %c0_74 = arith.constant 0 : index
    %158 = vector.load %arg8[%c0_73, %c0_74] : memref<16x128xf32, #tpu.memory_space<vmem>>, vector<16x128xf32>
    tpu.vector_store %arg8[%c0_73, %c0_74], %157 {strides = array<i32>} : memref<16x128xf32, #tpu.memory_space<vmem>>, vector<16x128xf32>,
    %c0_75 = arith.constant 0 : index
    %c0_76 = arith.constant 0 : index
    %159 = vector.load %arg9[%c0_75, %c0_76] : memref<16x128xf32, #tpu.memory_space<vmem>>, vector<16x128xf32>
    %cst_77 = arith.constant 1.000000e+00 : f32
    %160 = vector.broadcast %cst_77 : f32 to vector<16x128xf32>
    %161 = arith.subf %160, %149 : vector<16x128xf32>
    %162 = math.log %161 : vector<16x128xf32>
    %cst_78 = arith.constant 0.000000e+00 : f32
    %163 = vector.broadcast %cst_78 : f32 to vector<16x128xf32>
    %164 = arith.subf %163, %162 : vector<16x128xf32>
    %cst_79 = arith.constant 1.000000e+02 : f32
    %165 = vector.broadcast %cst_79 : f32 to vector<16x128xf32>
    %166 = arith.minimumf %164, %165 : vector<16x128xf32>
    %167 = arith.mulf %8, %166 : vector<16x128xf32>
    %168 = arith.addf %159, %167 : vector<16x128xf32>
    %c0_80 = arith.constant 0 : index
    %c0_81 = arith.constant 0 : index
    %169 = vector.load %arg9[%c0_80, %c0_81] : memref<16x128xf32, #tpu.memory_space<vmem>>, vector<16x128xf32>
    tpu.vector_store %arg9[%c0_80, %c0_81], %168 {strides = array<i32>} : memref<16x128xf32, #tpu.memory_space<vmem>>, vector<16x128xf32>,
    %cst_82 = arith.constant 0.000000e+00 : f32
    %170 = vector.broadcast %cst_82 : f32 to vector<16x128xf32>
    %cst_83 = arith.constant 0.000000e+00 : f32
    %171 = vector.broadcast %cst_83 : f32 to vector<16x128xf32>
    %172 = arith.cmpf oeq, %11, %171 : vector<16x128xf32>
    %173 = arith.extui %172 : vector<16x128xi1> to vector<16x128xi32>
    %174 = arith.sitofp %173 : vector<16x128xi32> to vector<16x128xf32>
    %c5 = arith.constant 5 : index
    %c0_84 = arith.constant 0 : index
    %c0_85 = arith.constant 0 : index
    %175 = vector.load %arg3[%c5, %c0_84, %c0_85] : memref<9x16x128xf32, #tpu.memory_space<vmem>>, vector<1x16x128xf32>
    %176 = vector.shape_cast %175 : vector<1x16x128xf32> to vector<16x128xf32>
    %177 = math.log %176 : vector<16x128xf32>
    %cst_86 = arith.constant -1.000000e+02 : f32
    %178 = vector.broadcast %cst_86 : f32 to vector<16x128xf32>
    %179 = arith.maximumf %177, %178 : vector<16x128xf32>
    %cst_87 = arith.constant 1.000000e+00 : f32
    %180 = vector.broadcast %cst_87 : f32 to vector<16x128xf32>
    %181 = arith.subf %180, %176 : vector<16x128xf32>
    %182 = math.log %181 : vector<16x128xf32>
    %cst_88 = arith.constant -1.000000e+02 : f32
    %183 = vector.broadcast %cst_88 : f32 to vector<16x128xf32>
    %184 = arith.maximumf %182, %183 : vector<16x128xf32>
    %185 = arith.subf %184, %179 : vector<16x128xf32>
    %186 = arith.mulf %174, %185 : vector<16x128xf32>
    %187 = arith.subf %186, %184 : vector<16x128xf32>
    %188 = arith.addf %170, %187 : vector<16x128xf32>
    %cst_89 = arith.constant 1.000000e+00 : f32
    %189 = vector.broadcast %cst_89 : f32 to vector<16x128xf32>
    %190 = arith.cmpf oeq, %11, %189 : vector<16x128xf32>
    %191 = arith.extui %190 : vector<16x128xi1> to vector<16x128xi32>
    %192 = arith.sitofp %191 : vector<16x128xi32> to vector<16x128xf32>
    %c6 = arith.constant 6 : index
    %c0_90 = arith.constant 0 : index
    %c0_91 = arith.constant 0 : index
    %193 = vector.load %arg3[%c6, %c0_90, %c0_91] : memref<9x16x128xf32, #tpu.memory_space<vmem>>, vector<1x16x128xf32>
    %194 = vector.shape_cast %193 : vector<1x16x128xf32> to vector<16x128xf32>
    %195 = math.log %194 : vector<16x128xf32>
    %cst_92 = arith.constant -1.000000e+02 : f32
    %196 = vector.broadcast %cst_92 : f32 to vector<16x128xf32>
    %197 = arith.maximumf %195, %196 : vector<16x128xf32>
    %cst_93 = arith.constant 1.000000e+00 : f32
    %198 = vector.broadcast %cst_93 : f32 to vector<16x128xf32>
    %199 = arith.subf %198, %194 : vector<16x128xf32>
    %200 = math.log %199 : vector<16x128xf32>
    %cst_94 = arith.constant -1.000000e+02 : f32
    %201 = vector.broadcast %cst_94 : f32 to vector<16x128xf32>
    %202 = arith.maximumf %200, %201 : vector<16x128xf32>
    %203 = arith.subf %202, %197 : vector<16x128xf32>
    %204 = arith.mulf %192, %203 : vector<16x128xf32>
    %205 = arith.subf %204, %202 : vector<16x128xf32>
    %206 = arith.addf %188, %205 : vector<16x128xf32>
    %cst_95 = arith.constant 2.000000e+00 : f32
    %207 = vector.broadcast %cst_95 : f32 to vector<16x128xf32>
    %208 = arith.cmpf oeq, %11, %207 : vector<16x128xf32>
    %209 = arith.extui %208 : vector<16x128xi1> to vector<16x128xi32>
    %210 = arith.sitofp %209 : vector<16x128xi32> to vector<16x128xf32>
    %c7 = arith.constant 7 : index
    %c0_96 = arith.constant 0 : index
    %c0_97 = arith.constant 0 : index
    %211 = vector.load %arg3[%c7, %c0_96, %c0_97] : memref<9x16x128xf32, #tpu.memory_space<vmem>>, vector<1x16x128xf32>
    %212 = vector.shape_cast %211 : vector<1x16x128xf32> to vector<16x128xf32>
    %213 = math.log %212 : vector<16x128xf32>
    %cst_98 = arith.constant -1.000000e+02 : f32
    %214 = vector.broadcast %cst_98 : f32 to vector<16x128xf32>
    %215 = arith.maximumf %213, %214 : vector<16x128xf32>
    %cst_99 = arith.constant 1.000000e+00 : f32
    %216 = vector.broadcast %cst_99 : f32 to vector<16x128xf32>
    %217 = arith.subf %216, %212 : vector<16x128xf32>
    %218 = math.log %217 : vector<16x128xf32>
    %cst_100 = arith.constant -1.000000e+02 : f32
    %219 = vector.broadcast %cst_100 : f32 to vector<16x128xf32>
    %220 = arith.maximumf %218, %219 : vector<16x128xf32>
    %221 = arith.subf %220, %215 : vector<16x128xf32>
    %222 = arith.mulf %210, %221 : vector<16x128xf32>
    %223 = arith.subf %222, %220 : vector<16x128xf32>
    %224 = arith.addf %206, %223 : vector<16x128xf32>
    %cst_101 = arith.constant 3.000000e+00 : f32
    %225 = vector.broadcast %cst_101 : f32 to vector<16x128xf32>
    %226 = arith.cmpf oeq, %11, %225 : vector<16x128xf32>
    %227 = arith.extui %226 : vector<16x128xi1> to vector<16x128xi32>
    %228 = arith.sitofp %227 : vector<16x128xi32> to vector<16x128xf32>
    %c8 = arith.constant 8 : index
    %c0_102 = arith.constant 0 : index
    %c0_103 = arith.constant 0 : index
    %229 = vector.load %arg3[%c8, %c0_102, %c0_103] : memref<9x16x128xf32, #tpu.memory_space<vmem>>, vector<1x16x128xf32>
    %230 = vector.shape_cast %229 : vector<1x16x128xf32> to vector<16x128xf32>
    %231 = math.log %230 : vector<16x128xf32>
    %cst_104 = arith.constant -1.000000e+02 : f32
    %232 = vector.broadcast %cst_104 : f32 to vector<16x128xf32>
    %233 = arith.maximumf %231, %232 : vector<16x128xf32>
    %cst_105 = arith.constant 1.000000e+00 : f32
    %234 = vector.broadcast %cst_105 : f32 to vector<16x128xf32>
    %235 = arith.subf %234, %230 : vector<16x128xf32>
    %236 = math.log %235 : vector<16x128xf32>
    %cst_106 = arith.constant -1.000000e+02 : f32
    %237 = vector.broadcast %cst_106 : f32 to vector<16x128xf32>
    %238 = arith.maximumf %236, %237 : vector<16x128xf32>
    %239 = arith.subf %238, %233 : vector<16x128xf32>
    %240 = arith.mulf %228, %239 : vector<16x128xf32>
    %241 = arith.subf %240, %238 : vector<16x128xf32>
    %242 = arith.addf %224, %241 : vector<16x128xf32>
    %c0_107 = arith.constant 0 : index
    %c0_108 = arith.constant 0 : index
    %243 = vector.load %arg10[%c0_107, %c0_108] : memref<16x128xf32, #tpu.memory_space<vmem>>, vector<16x128xf32>
    %244 = arith.mulf %5, %242 : vector<16x128xf32>
    %245 = arith.addf %243, %244 : vector<16x128xf32>
    %c0_109 = arith.constant 0 : index
    %c0_110 = arith.constant 0 : index
    %246 = vector.load %arg10[%c0_109, %c0_110] : memref<16x128xf32, #tpu.memory_space<vmem>>, vector<16x128xf32>
    tpu.vector_store %arg10[%c0_109, %c0_110], %245 {strides = array<i32>} : memref<16x128xf32, #tpu.memory_space<vmem>>, vector<16x128xf32>,
    %c0_i32_111 = arith.constant 0 : i32
    %247 = arith.cmpi eq, %arg1, %c0_i32_111 : i32
    %248 = arith.extui %247 : i1 to i32
    %c0_i32_112 = arith.constant 0 : i32
    %249 = arith.cmpi ne, %248, %c0_i32_112 : i32
    scf.if %249 {
      %250 = tpu.iota {dimensions = array<i32: 0>} : vector<8x128xi32>
      %cst_113 = arith.constant 0.000000e+00 : f32
      %251 = vector.broadcast %cst_113 : f32 to vector<8x128xf32>
      %c0_i32_114 = arith.constant 0 : i32
      %252 = vector.broadcast %c0_i32_114 : i32 to vector<8x128xi32>
      %253 = arith.cmpi eq, %250, %252 : vector<8x128xi32>
      %c0_115 = arith.constant 0 : index
      %c0_116 = arith.constant 0 : index
      %254 = vector.load %arg7[%c0_115, %c0_116] : memref<16x128xf32, #tpu.memory_space<vmem>>, vector<16x128xf32>
      %cst_117 = arith.constant dense<0.000000e+00> : vector<128xf32>
      %255 = vector.multi_reduction <add>, %254, %cst_117 [0] : vector<16x128xf32> to vector<128xf32>
      %256 = vector.shape_cast %255 : vector<128xf32> to vector<1x128xf32>
      %257 = vector.shape_cast %256 : vector<1x128xf32> to vector<1x128xf32>
      %258 = vector.broadcast %257 : vector<1x128xf32> to vector<8x128xf32>
      %259 = arith.select %253, %258, %251 : vector<8x128xi1>, vector<8x128xf32>
      %c1_i32_118 = arith.constant 1 : i32
      %260 = vector.broadcast %c1_i32_118 : i32 to vector<8x128xi32>
      %261 = arith.cmpi eq, %250, %260 : vector<8x128xi32>
      %c0_119 = arith.constant 0 : index
      %c0_120 = arith.constant 0 : index
      %262 = vector.load %arg8[%c0_119, %c0_120] : memref<16x128xf32, #tpu.memory_space<vmem>>, vector<16x128xf32>
      %cst_121 = arith.constant dense<0.000000e+00> : vector<128xf32>
      %263 = vector.multi_reduction <add>, %262, %cst_121 [0] : vector<16x128xf32> to vector<128xf32>
      %264 = vector.shape_cast %263 : vector<128xf32> to vector<1x128xf32>
      %265 = vector.shape_cast %264 : vector<1x128xf32> to vector<1x128xf32>
      %266 = vector.broadcast %265 : vector<1x128xf32> to vector<8x128xf32>
      %267 = arith.select %261, %266, %259 : vector<8x128xi1>, vector<8x128xf32>
      %c2_i32_122 = arith.constant 2 : i32
      %268 = vector.broadcast %c2_i32_122 : i32 to vector<8x128xi32>
      %269 = arith.cmpi eq, %250, %268 : vector<8x128xi32>
      %c0_123 = arith.constant 0 : index
      %c0_124 = arith.constant 0 : index
      %270 = vector.load %arg9[%c0_123, %c0_124] : memref<16x128xf32, #tpu.memory_space<vmem>>, vector<16x128xf32>
      %cst_125 = arith.constant dense<0.000000e+00> : vector<128xf32>
      %271 = vector.multi_reduction <add>, %270, %cst_125 [0] : vector<16x128xf32> to vector<128xf32>
      %272 = vector.shape_cast %271 : vector<128xf32> to vector<1x128xf32>
      %273 = vector.shape_cast %272 : vector<1x128xf32> to vector<1x128xf32>
      %274 = vector.broadcast %273 : vector<1x128xf32> to vector<8x128xf32>
      %275 = arith.select %269, %274, %267 : vector<8x128xi1>, vector<8x128xf32>
      %c3_i32_126 = arith.constant 3 : i32
      %276 = vector.broadcast %c3_i32_126 : i32 to vector<8x128xi32>
      %277 = arith.cmpi eq, %250, %276 : vector<8x128xi32>
      %c0_127 = arith.constant 0 : index
      %c0_128 = arith.constant 0 : index
      %278 = vector.load %arg10[%c0_127, %c0_128] : memref<16x128xf32, #tpu.memory_space<vmem>>, vector<16x128xf32>
      %cst_129 = arith.constant dense<0.000000e+00> : vector<128xf32>
      %279 = vector.multi_reduction <add>, %278, %cst_129 [0] : vector<16x128xf32> to vector<128xf32>
      %280 = vector.shape_cast %279 : vector<128xf32> to vector<1x128xf32>
      %281 = vector.shape_cast %280 : vector<1x128xf32> to vector<1x128xf32>
      %282 = vector.broadcast %281 : vector<1x128xf32> to vector<8x128xf32>
      %283 = arith.select %277, %282, %275 : vector<8x128xi1>, vector<8x128xf32>
      %c0_130 = arith.constant 0 : index
      %c0_131 = arith.constant 0 : index
      %c0_132 = arith.constant 0 : index
      %284 = vector.load %arg6[%c0_130, %c0_131, %c0_132] : memref<1x8x128xf32, #tpu.memory_space<vmem>>, vector<1x8x128xf32>
      %285 = vector.shape_cast %284 : vector<1x8x128xf32> to vector<8x128xf32>
      %286 = vector.shape_cast %283 : vector<8x128xf32> to vector<1x8x128xf32>
      tpu.vector_store %arg6[%c0_130, %c0_131, %c0_132], %286 {strides = array<i32>} : memref<1x8x128xf32, #tpu.memory_space<vmem>>, vector<1x8x128xf32>,
    } else {
    }
    return
  }
  func.func @transform_0(%arg0: i32, %arg1: i32, %arg2: memref<3xi32, #tpu.memory_space<smem>>) -> (i32, i32, i32) {
    %c1_i32 = arith.constant 1 : i32
    %0 = arith.muli %arg1, %c1_i32 : i32
    %1 = arith.addi %0, %arg0 : i32
    %c0_i32 = arith.constant 0 : i32
    %c0_i32_0 = arith.constant 0 : i32
    %c0_i32_1 = arith.constant 0 : i32
    return %c0_i32, %1, %c0_i32_0 : i32, i32, i32
  }
  func.func @transform_1(%arg0: i32, %arg1: i32, %arg2: memref<3xi32, #tpu.memory_space<smem>>) -> (i32, i32, i32) {
    %c1_i32 = arith.constant 1 : i32
    %0 = arith.muli %arg1, %c1_i32 : i32
    %1 = arith.addi %0, %arg0 : i32
    %c0_i32 = arith.constant 0 : i32
    %c0_i32_0 = arith.constant 0 : i32
    %c0_i32_1 = arith.constant 0 : i32
    return %c0_i32, %1, %c0_i32_0 : i32, i32, i32
  }
  func.func @transform_2(%arg0: i32, %arg1: i32, %arg2: memref<3xi32, #tpu.memory_space<smem>>) -> (i32, i32, i32) {
    %c1_i32 = arith.constant 1 : i32
    %0 = arith.muli %arg1, %c1_i32 : i32
    %1 = arith.addi %0, %arg0 : i32
    %c0_i32 = arith.constant 0 : i32
    %c0_i32_0 = arith.constant 0 : i32
    %c0_i32_1 = arith.constant 0 : i32
    return %c0_i32, %1, %c0_i32_0 : i32, i32, i32
  }
  func.func @transform_3(%arg0: i32, %arg1: i32, %arg2: memref<3xi32, #tpu.memory_space<smem>>) -> (i32, i32, i32) {
    %c0_i32 = arith.constant 0 : i32
    %c0_i32_0 = arith.constant 0 : i32
    %c0_i32_1 = arith.constant 0 : i32
    return %arg0, %c0_i32, %c0_i32_0 : i32, i32, i32
  }
}

module attributes {stable_mosaic.version = 11 : i64} {
  func.func @_loss_kernel(%arg0: i32, %arg1: i32, %arg2: memref<3xi32, #tpu.memory_space<smem>>, %arg3: memref<9x16x128xf32, #tpu.memory_space<vmem>>, %arg4: memref<4x16x128xf32, #tpu.memory_space<vmem>>, %arg5: memref<3x16x128xbf16, #tpu.memory_space<vmem>>, %arg6: memref<1x8x128xf32, #tpu.memory_space<vmem>>, %arg7: memref<16x128xf32, #tpu.memory_space<vmem>>, %arg8: memref<16x128xf32, #tpu.memory_space<vmem>>, %arg9: memref<16x128xf32, #tpu.memory_space<vmem>>, %arg10: memref<16x128xf32, #tpu.memory_space<vmem>>) attributes {dimension_semantics = [#tpu.dimension_semantics<parallel>, #tpu.dimension_semantics<arbitrary>], iteration_bounds = array<i64: 1, 1>, scalar_prefetch = 1 : i64, scratch_operands = 4 : i64, tpu.core_type = #tpu.core_type<tc>, window_params = [{transform_indices = @transform_0, window_bounds = array<i64: 9, 16, 128>}, {transform_indices = @transform_1, window_bounds = array<i64: 4, 16, 128>}, {transform_indices = @transform_2, window_bounds = array<i64: 3, 16, 128>}, {transform_indices = @transform_3, window_bounds = array<i64: 1, 8, 128>}]} {
    %c0_i32 = arith.constant 0 : i32
    %0 = arith.cmpi eq, %arg1, %c0_i32 : i32
    %1 = arith.extui %0 : i1 to i32
    %c0_i32_0 = arith.constant 0 : i32
    %2 = arith.cmpi ne, %1, %c0_i32_0 : i32
    scf.if %2 {
      %cst_113 = arith.constant 0.000000e+00 : f32
      %250 = vector.broadcast %cst_113 : f32 to vector<16x128xf32>
      %c0_114 = arith.constant 0 : index
      %c0_115 = arith.constant 0 : index
      %251 = vector.load %arg7[%c0_114, %c0_115] : memref<16x128xf32, #tpu.memory_space<vmem>>, vector<16x128xf32>
      tpu.vector_store %arg7[%c0_114, %c0_115], %250 {strides = array<i32>} : memref<16x128xf32, #tpu.memory_space<vmem>>, vector<16x128xf32>,
      %cst_116 = arith.constant 0.000000e+00 : f32
      %252 = vector.broadcast %cst_116 : f32 to vector<16x128xf32>
      %c0_117 = arith.constant 0 : index
      %c0_118 = arith.constant 0 : index
      %253 = vector.load %arg8[%c0_117, %c0_118] : memref<16x128xf32, #tpu.memory_space<vmem>>, vector<16x128xf32>
      tpu.vector_store %arg8[%c0_117, %c0_118], %252 {strides = array<i32>} : memref<16x128xf32, #tpu.memory_space<vmem>>, vector<16x128xf32>,
      %cst_119 = arith.constant 0.000000e+00 : f32
      %254 = vector.broadcast %cst_119 : f32 to vector<16x128xf32>
      %c0_120 = arith.constant 0 : index
      %c0_121 = arith.constant 0 : index
      %255 = vector.load %arg9[%c0_120, %c0_121] : memref<16x128xf32, #tpu.memory_space<vmem>>, vector<16x128xf32>
      tpu.vector_store %arg9[%c0_120, %c0_121], %254 {strides = array<i32>} : memref<16x128xf32, #tpu.memory_space<vmem>>, vector<16x128xf32>,
      %cst_122 = arith.constant 0.000000e+00 : f32
      %256 = vector.broadcast %cst_122 : f32 to vector<16x128xf32>
      %c0_123 = arith.constant 0 : index
      %c0_124 = arith.constant 0 : index
      %257 = vector.load %arg10[%c0_123, %c0_124] : memref<16x128xf32, #tpu.memory_space<vmem>>, vector<16x128xf32>
      tpu.vector_store %arg10[%c0_123, %c0_124], %256 {strides = array<i32>} : memref<16x128xf32, #tpu.memory_space<vmem>>, vector<16x128xf32>,
    } else {
    }
    %c0 = arith.constant 0 : index
    %c0_1 = arith.constant 0 : index
    %c0_2 = arith.constant 0 : index
    %3 = vector.load %arg5[%c0, %c0_1, %c0_2] : memref<3x16x128xbf16, #tpu.memory_space<vmem>>, vector<1x16x128xbf16>
    %4 = vector.shape_cast %3 : vector<1x16x128xbf16> to vector<16x128xbf16>
    %5 = arith.extf %4 : vector<16x128xbf16> to vector<16x128xf32>
    %c1 = arith.constant 1 : index
    %c0_3 = arith.constant 0 : index
    %c0_4 = arith.constant 0 : index
    %6 = vector.load %arg5[%c1, %c0_3, %c0_4] : memref<3x16x128xbf16, #tpu.memory_space<vmem>>, vector<1x16x128xbf16>
    %7 = vector.shape_cast %6 : vector<1x16x128xbf16> to vector<16x128xbf16>
    %8 = arith.extf %7 : vector<16x128xbf16> to vector<16x128xf32>
    %c2 = arith.constant 2 : index
    %c0_5 = arith.constant 0 : index
    %c0_6 = arith.constant 0 : index
    %9 = vector.load %arg5[%c2, %c0_5, %c0_6] : memref<3x16x128xbf16, #tpu.memory_space<vmem>>, vector<1x16x128xbf16>
    %10 = vector.shape_cast %9 : vector<1x16x128xbf16> to vector<16x128xbf16>
    %11 = arith.extf %10 : vector<16x128xbf16> to vector<16x128xf32>
    %c1_i32 = arith.constant 1 : i32
    %12 = arith.muli %arg1, %c1_i32 : i32
    %13 = arith.addi %12, %arg0 : i32
    %c3_i32 = arith.constant 3 : i32
    %14 = arith.muli %c3_i32, %13 : i32
    %15 = arith.index_cast %14 : i32 to index
    %16 = memref.load %arg2[%15] : memref<3xi32, #tpu.memory_space<smem>>
    %c3_i32_7 = arith.constant 3 : i32
    %17 = arith.muli %c3_i32_7, %13 : i32
    %c1_i32_8 = arith.constant 1 : i32
    %18 = arith.addi %17, %c1_i32_8 : i32
    %19 = arith.index_cast %18 : i32 to index
    %20 = memref.load %arg2[%19] : memref<3xi32, #tpu.memory_space<smem>>
    %c3_i32_9 = arith.constant 3 : i32
    %21 = arith.muli %c3_i32_9, %13 : i32
    %c2_i32 = arith.constant 2 : i32
    %22 = arith.addi %21, %c2_i32 : i32
    %23 = arith.index_cast %22 : i32 to index
    %24 = memref.load %arg2[%23] : memref<3xi32, #tpu.memory_space<smem>>
    %25 = tpu.iota {dimensions = array<i32: 0>} : vector<16x128xi32>
    %c128_i32 = arith.constant 128 : i32
    %26 = vector.broadcast %c128_i32 : i32 to vector<16x128xi32>
    %27 = arith.muli %25, %26 : vector<16x128xi32>
    %28 = tpu.iota {dimensions = array<i32: 1>} : vector<16x128xi32>
    %29 = arith.addi %27, %28 : vector<16x128xi32>
    %30 = vector.broadcast %16 : i32 to vector<16x128xi32>
    %31 = arith.addi %30, %29 : vector<16x128xi32>
    %32 = arith.sitofp %31 : vector<16x128xi32> to vector<16x128xf32>
    %cst = arith.constant 5.000000e-01 : f32
    %33 = vector.broadcast %cst : f32 to vector<16x128xf32>
    %34 = arith.addf %32, %33 : vector<16x128xf32>
    %cst_10 = arith.constant 2.500000e-01 : f32
    %35 = vector.broadcast %cst_10 : f32 to vector<16x128xf32>
    %36 = arith.mulf %34, %35 : vector<16x128xf32>
    %37 = math.floor %36 : vector<16x128xf32>
    %cst_11 = arith.constant 4.000000e+00 : f32
    %38 = vector.broadcast %cst_11 : f32 to vector<16x128xf32>
    %39 = arith.mulf %37, %38 : vector<16x128xf32>
    %40 = arith.subf %32, %39 : vector<16x128xf32>
    %41 = arith.sitofp %20 : i32 to f32
    %42 = vector.broadcast %41 : f32 to vector<16x128xf32>
    %43 = arith.addf %42, %37 : vector<16x128xf32>
    %cst_12 = arith.constant 5.000000e-01 : f32
    %44 = vector.broadcast %cst_12 : f32 to vector<16x128xf32>
    %45 = arith.addf %43, %44 : vector<16x128xf32>
    %cst_13 = arith.constant 2.500000e-01 : f32
    %46 = vector.broadcast %cst_13 : f32 to vector<16x128xf32>
    %47 = arith.mulf %45, %46 : vector<16x128xf32>
    %48 = math.floor %47 : vector<16x128xf32>
    %cst_14 = arith.constant 4.000000e+00 : f32
    %49 = vector.broadcast %cst_14 : f32 to vector<16x128xf32>
    %50 = arith.mulf %48, %49 : vector<16x128xf32>
    %51 = arith.subf %43, %50 : vector<16x128xf32>
    %52 = arith.sitofp %24 : i32 to f32
    %53 = vector.broadcast %52 : f32 to vector<16x128xf32>
    %54 = arith.addf %53, %48 : vector<16x128xf32>
    %cst_15 = arith.constant 5.000000e-01 : f32
    %55 = vector.broadcast %cst_15 : f32 to vector<16x128xf32>
    %56 = arith.addf %54, %55 : vector<16x128xf32>
    %cst_16 = arith.constant 0.333333343 : f32
    %57 = vector.broadcast %cst_16 : f32 to vector<16x128xf32>
    %58 = arith.mulf %56, %57 : vector<16x128xf32>
    %59 = math.floor %58 : vector<16x128xf32>
    %cst_17 = arith.constant 3.000000e+00 : f32
    %60 = vector.broadcast %cst_17 : f32 to vector<16x128xf32>
    %61 = arith.mulf %59, %60 : vector<16x128xf32>
    %62 = arith.subf %54, %61 : vector<16x128xf32>
    %cst_18 = arith.constant 1.000000e+00 : f32
    %63 = vector.broadcast %cst_18 : f32 to vector<16x128xf32>
    %cst_19 = arith.constant 0.833333313 : f32
    %64 = vector.broadcast %cst_19 : f32 to vector<16x128xf32>
    %cst_20 = arith.constant 1.000000e+00 : f32
    %65 = vector.broadcast %cst_20 : f32 to vector<16x128xf32>
    %66 = arith.cmpf oeq, %62, %65 : vector<16x128xf32>
    %cst_21 = arith.constant 0.555555582 : f32
    %67 = vector.broadcast %cst_21 : f32 to vector<16x128xf32>
    %68 = arith.select %66, %67, %63 : vector<16x128xi1>, vector<16x128xf32>
    %cst_22 = arith.constant 0.454545468 : f32
    %69 = vector.broadcast %cst_22 : f32 to vector<16x128xf32>
    %70 = arith.select %66, %69, %64 : vector<16x128xi1>, vector<16x128xf32>
    %cst_23 = arith.constant 2.000000e+00 : f32
    %71 = vector.broadcast %cst_23 : f32 to vector<16x128xf32>
    %72 = arith.cmpf oeq, %62, %71 : vector<16x128xf32>
    %cst_24 = arith.constant 4.000000e-01 : f32
    %73 = vector.broadcast %cst_24 : f32 to vector<16x128xf32>
    %74 = arith.select %72, %73, %68 : vector<16x128xi1>, vector<16x128xf32>
    %cst_25 = arith.constant 0.333333343 : f32
    %75 = vector.broadcast %cst_25 : f32 to vector<16x128xf32>
    %76 = arith.select %72, %75, %70 : vector<16x128xi1>, vector<16x128xf32>
    %c0_26 = arith.constant 0 : index
    %c0_27 = arith.constant 0 : index
    %c0_28 = arith.constant 0 : index
    %77 = vector.load %arg3[%c0_26, %c0_27, %c0_28] : memref<9x16x128xf32, #tpu.memory_space<vmem>>, vector<1x16x128xf32>
    %78 = vector.shape_cast %77 : vector<1x16x128xf32> to vector<16x128xf32>
    %cst_29 = arith.constant 4.000000e+00 : f32
    %79 = vector.broadcast %cst_29 : f32 to vector<16x128xf32>
    %80 = arith.mulf %78, %79 : vector<16x128xf32>
    %81 = arith.subf %80, %40 : vector<16x128xf32>
    %cst_30 = arith.constant 9.99999974E-6 : f32
    %cst_31 = arith.constant 0.999989986 : f32
    %82 = vector.broadcast %cst_30 : f32 to vector<16x128xf32>
    %83 = arith.maximumf %82, %81 : vector<16x128xf32>
    %84 = vector.broadcast %cst_31 : f32 to vector<16x128xf32>
    %85 = arith.minimumf %84, %83 : vector<16x128xf32>
    %cst_32 = arith.constant 1.000000e+00 : f32
    %86 = vector.broadcast %cst_32 : f32 to vector<16x128xf32>
    %87 = arith.subf %86, %85 : vector<16x128xf32>
    %88 = tpu.reciprocal %87 {approx = true} : vector<16x128xf32> -> vector<16x128xf32>
    %89 = arith.mulf %85, %88 : vector<16x128xf32>
    %cst_33 = arith.constant 9.99999974E-6 : f32
    %90 = vector.broadcast %cst_33 : f32 to vector<16x128xf32>
    %91 = arith.addf %89, %90 : vector<16x128xf32>
    %92 = math.log %91 : vector<16x128xf32>
    %c1_34 = arith.constant 1 : index
    %c0_35 = arith.constant 0 : index
    %c0_36 = arith.constant 0 : index
    %93 = vector.load %arg3[%c1_34, %c0_35, %c0_36] : memref<9x16x128xf32, #tpu.memory_space<vmem>>, vector<1x16x128xf32>
    %94 = vector.shape_cast %93 : vector<1x16x128xf32> to vector<16x128xf32>
    %cst_37 = arith.constant 4.000000e+00 : f32
    %95 = vector.broadcast %cst_37 : f32 to vector<16x128xf32>
    %96 = arith.mulf %94, %95 : vector<16x128xf32>
    %97 = arith.subf %96, %51 : vector<16x128xf32>
    %cst_38 = arith.constant 9.99999974E-6 : f32
    %cst_39 = arith.constant 0.999989986 : f32
    %98 = vector.broadcast %cst_38 : f32 to vector<16x128xf32>
    %99 = arith.maximumf %98, %97 : vector<16x128xf32>
    %100 = vector.broadcast %cst_39 : f32 to vector<16x128xf32>
    %101 = arith.minimumf %100, %99 : vector<16x128xf32>
    %cst_40 = arith.constant 1.000000e+00 : f32
    %102 = vector.broadcast %cst_40 : f32 to vector<16x128xf32>
    %103 = arith.subf %102, %101 : vector<16x128xf32>
    %104 = tpu.reciprocal %103 {approx = true} : vector<16x128xf32> -> vector<16x128xf32>
    %105 = arith.mulf %101, %104 : vector<16x128xf32>
    %cst_41 = arith.constant 9.99999974E-6 : f32
    %106 = vector.broadcast %cst_41 : f32 to vector<16x128xf32>
    %107 = arith.addf %105, %106 : vector<16x128xf32>
    %108 = math.log %107 : vector<16x128xf32>
    %c2_42 = arith.constant 2 : index
    %c0_43 = arith.constant 0 : index
    %c0_44 = arith.constant 0 : index
    %109 = vector.load %arg3[%c2_42, %c0_43, %c0_44] : memref<9x16x128xf32, #tpu.memory_space<vmem>>, vector<1x16x128xf32>
    %110 = vector.shape_cast %109 : vector<1x16x128xf32> to vector<16x128xf32>
    %cst_45 = arith.constant 4.000000e+00 : f32
    %111 = vector.broadcast %cst_45 : f32 to vector<16x128xf32>
    %112 = arith.mulf %110, %111 : vector<16x128xf32>
    %113 = arith.mulf %112, %74 : vector<16x128xf32>
    %cst_46 = arith.constant 9.99999974E-6 : f32
    %114 = vector.broadcast %cst_46 : f32 to vector<16x128xf32>
    %115 = arith.maximumf %113, %114 : vector<16x128xf32>
    %116 = math.log %115 : vector<16x128xf32>
    %c3 = arith.constant 3 : index
    %c0_47 = arith.constant 0 : index
    %c0_48 = arith.constant 0 : index
    %117 = vector.load %arg3[%c3, %c0_47, %c0_48] : memref<9x16x128xf32, #tpu.memory_space<vmem>>, vector<1x16x128xf32>
    %118 = vector.shape_cast %117 : vector<1x16x128xf32> to vector<16x128xf32>
    %cst_49 = arith.constant 4.000000e+00 : f32
    %119 = vector.broadcast %cst_49 : f32 to vector<16x128xf32>
    %120 = arith.mulf %118, %119 : vector<16x128xf32>
    %121 = arith.mulf %120, %76 : vector<16x128xf32>
    %cst_50 = arith.constant 9.99999974E-6 : f32
    %122 = vector.broadcast %cst_50 : f32 to vector<16x128xf32>
    %123 = arith.maximumf %121, %122 : vector<16x128xf32>
    %124 = math.log %123 : vector<16x128xf32>
    %c0_51 = arith.constant 0 : index
    %c0_52 = arith.constant 0 : index
    %c0_53 = arith.constant 0 : index
    %125 = vector.load %arg4[%c0_51, %c0_52, %c0_53] : memref<4x16x128xf32, #tpu.memory_space<vmem>>, vector<1x16x128xf32>
    %126 = vector.shape_cast %125 : vector<1x16x128xf32> to vector<16x128xf32>
    %127 = arith.subf %92, %126 : vector<16x128xf32>
    %128 = arith.mulf %127, %127 : vector<16x128xf32>
    %c1_54 = arith.constant 1 : index
    %c0_55 = arith.constant 0 : index
    %c0_56 = arith.constant 0 : index
    %129 = vector.load %arg4[%c1_54, %c0_55, %c0_56] : memref<4x16x128xf32, #tpu.memory_space<vmem>>, vector<1x16x128xf32>
    %130 = vector.shape_cast %129 : vector<1x16x128xf32> to vector<16x128xf32>
    %131 = arith.subf %108, %130 : vector<16x128xf32>
    %132 = arith.mulf %131, %131 : vector<16x128xf32>
    %133 = arith.addf %128, %132 : vector<16x128xf32>
    %c2_57 = arith.constant 2 : index
    %c0_58 = arith.constant 0 : index
    %c0_59 = arith.constant 0 : index
    %134 = vector.load %arg4[%c2_57, %c0_58, %c0_59] : memref<4x16x128xf32, #tpu.memory_space<vmem>>, vector<1x16x128xf32>
    %135 = vector.shape_cast %134 : vector<1x16x128xf32> to vector<16x128xf32>
    %136 = arith.subf %116, %135 : vector<16x128xf32>
    %137 = arith.mulf %136, %136 : vector<16x128xf32>
    %138 = arith.addf %133, %137 : vector<16x128xf32>
    %c3_60 = arith.constant 3 : index
    %c0_61 = arith.constant 0 : index
    %c0_62 = arith.constant 0 : index
    %139 = vector.load %arg4[%c3_60, %c0_61, %c0_62] : memref<4x16x128xf32, #tpu.memory_space<vmem>>, vector<1x16x128xf32>
    %140 = vector.shape_cast %139 : vector<1x16x128xf32> to vector<16x128xf32>
    %141 = arith.subf %124, %140 : vector<16x128xf32>
    %142 = arith.mulf %141, %141 : vector<16x128xf32>
    %143 = arith.addf %138, %142 : vector<16x128xf32>
    %c0_63 = arith.constant 0 : index
    %c0_64 = arith.constant 0 : index
    %144 = vector.load %arg7[%c0_63, %c0_64] : memref<16x128xf32, #tpu.memory_space<vmem>>, vector<16x128xf32>
    %145 = arith.mulf %5, %143 : vector<16x128xf32>
    %146 = arith.addf %144, %145 : vector<16x128xf32>
    %c0_65 = arith.constant 0 : index
    %c0_66 = arith.constant 0 : index
    %147 = vector.load %arg7[%c0_65, %c0_66] : memref<16x128xf32, #tpu.memory_space<vmem>>, vector<16x128xf32>
    tpu.vector_store %arg7[%c0_65, %c0_66], %146 {strides = array<i32>} : memref<16x128xf32, #tpu.memory_space<vmem>>, vector<16x128xf32>,
    %c4 = arith.constant 4 : index
    %c0_67 = arith.constant 0 : index
    %c0_68 = arith.constant 0 : index
    %148 = vector.load %arg3[%c4, %c0_67, %c0_68] : memref<9x16x128xf32, #tpu.memory_space<vmem>>, vector<1x16x128xf32>
    %149 = vector.shape_cast %148 : vector<1x16x128xf32> to vector<16x128xf32>
    %c0_69 = arith.constant 0 : index
    %c0_70 = arith.constant 0 : index
    %150 = vector.load %arg8[%c0_69, %c0_70] : memref<16x128xf32, #tpu.memory_space<vmem>>, vector<16x128xf32>
    %151 = math.log %149 : vector<16x128xf32>
    %cst_71 = arith.constant 0.000000e+00 : f32
    %152 = vector.broadcast %cst_71 : f32 to vector<16x128xf32>
    %153 = arith.subf %152, %151 : vector<16x128xf32>
    %cst_72 = arith.constant 1.000000e+02 : f32
    %154 = vector.broadcast %cst_72 : f32 to vector<16x128xf32>
    %155 = arith.minimumf %153, %154 : vector<16x128xf32>
    %156 = arith.mulf %5, %155 : vector<16x128xf32>
    %157 = arith.addf %150, %156 : vector<16x128xf32>
    %c0_73 = arith.constant 0 : index
    %c0_74 = arith.constant 0 : index
    %158 = vector.load %arg8[%c0_73, %c0_74] : memref<16x128xf32, #tpu.memory_space<vmem>>, vector<16x128xf32>
    tpu.vector_store %arg8[%c0_73, %c0_74], %157 {strides = array<i32>} : memref<16x128xf32, #tpu.memory_space<vmem>>, vector<16x128xf32>,
    %c0_75 = arith.constant 0 : index
    %c0_76 = arith.constant 0 : index
    %159 = vector.load %arg9[%c0_75, %c0_76] : memref<16x128xf32, #tpu.memory_space<vmem>>, vector<16x128xf32>
    %cst_77 = arith.constant 1.000000e+00 : f32
    %160 = vector.broadcast %cst_77 : f32 to vector<16x128xf32>
    %161 = arith.subf %160, %149 : vector<16x128xf32>
    %162 = math.log %161 : vector<16x128xf32>
    %cst_78 = arith.constant 0.000000e+00 : f32
    %163 = vector.broadcast %cst_78 : f32 to vector<16x128xf32>
    %164 = arith.subf %163, %162 : vector<16x128xf32>
    %cst_79 = arith.constant 1.000000e+02 : f32
    %165 = vector.broadcast %cst_79 : f32 to vector<16x128xf32>
    %166 = arith.minimumf %164, %165 : vector<16x128xf32>
    %167 = arith.mulf %8, %166 : vector<16x128xf32>
    %168 = arith.addf %159, %167 : vector<16x128xf32>
    %c0_80 = arith.constant 0 : index
    %c0_81 = arith.constant 0 : index
    %169 = vector.load %arg9[%c0_80, %c0_81] : memref<16x128xf32, #tpu.memory_space<vmem>>, vector<16x128xf32>
    tpu.vector_store %arg9[%c0_80, %c0_81], %168 {strides = array<i32>} : memref<16x128xf32, #tpu.memory_space<vmem>>, vector<16x128xf32>,
    %cst_82 = arith.constant 0.000000e+00 : f32
    %170 = vector.broadcast %cst_82 : f32 to vector<16x128xf32>
    %cst_83 = arith.constant 0.000000e+00 : f32
    %171 = vector.broadcast %cst_83 : f32 to vector<16x128xf32>
    %172 = arith.cmpf oeq, %11, %171 : vector<16x128xf32>
    %173 = arith.extui %172 : vector<16x128xi1> to vector<16x128xi32>
    %174 = arith.sitofp %173 : vector<16x128xi32> to vector<16x128xf32>
    %c5 = arith.constant 5 : index
    %c0_84 = arith.constant 0 : index
    %c0_85 = arith.constant 0 : index
    %175 = vector.load %arg3[%c5, %c0_84, %c0_85] : memref<9x16x128xf32, #tpu.memory_space<vmem>>, vector<1x16x128xf32>
    %176 = vector.shape_cast %175 : vector<1x16x128xf32> to vector<16x128xf32>
    %177 = math.log %176 : vector<16x128xf32>
    %cst_86 = arith.constant -1.000000e+02 : f32
    %178 = vector.broadcast %cst_86 : f32 to vector<16x128xf32>
    %179 = arith.maximumf %177, %178 : vector<16x128xf32>
    %cst_87 = arith.constant 1.000000e+00 : f32
    %180 = vector.broadcast %cst_87 : f32 to vector<16x128xf32>
    %181 = arith.subf %180, %176 : vector<16x128xf32>
    %182 = math.log %181 : vector<16x128xf32>
    %cst_88 = arith.constant -1.000000e+02 : f32
    %183 = vector.broadcast %cst_88 : f32 to vector<16x128xf32>
    %184 = arith.maximumf %182, %183 : vector<16x128xf32>
    %185 = arith.subf %184, %179 : vector<16x128xf32>
    %186 = arith.mulf %174, %185 : vector<16x128xf32>
    %187 = arith.subf %186, %184 : vector<16x128xf32>
    %188 = arith.addf %170, %187 : vector<16x128xf32>
    %cst_89 = arith.constant 1.000000e+00 : f32
    %189 = vector.broadcast %cst_89 : f32 to vector<16x128xf32>
    %190 = arith.cmpf oeq, %11, %189 : vector<16x128xf32>
    %191 = arith.extui %190 : vector<16x128xi1> to vector<16x128xi32>
    %192 = arith.sitofp %191 : vector<16x128xi32> to vector<16x128xf32>
    %c6 = arith.constant 6 : index
    %c0_90 = arith.constant 0 : index
    %c0_91 = arith.constant 0 : index
    %193 = vector.load %arg3[%c6, %c0_90, %c0_91] : memref<9x16x128xf32, #tpu.memory_space<vmem>>, vector<1x16x128xf32>
    %194 = vector.shape_cast %193 : vector<1x16x128xf32> to vector<16x128xf32>
    %195 = math.log %194 : vector<16x128xf32>
    %cst_92 = arith.constant -1.000000e+02 : f32
    %196 = vector.broadcast %cst_92 : f32 to vector<16x128xf32>
    %197 = arith.maximumf %195, %196 : vector<16x128xf32>
    %cst_93 = arith.constant 1.000000e+00 : f32
    %198 = vector.broadcast %cst_93 : f32 to vector<16x128xf32>
    %199 = arith.subf %198, %194 : vector<16x128xf32>
    %200 = math.log %199 : vector<16x128xf32>
    %cst_94 = arith.constant -1.000000e+02 : f32
    %201 = vector.broadcast %cst_94 : f32 to vector<16x128xf32>
    %202 = arith.maximumf %200, %201 : vector<16x128xf32>
    %203 = arith.subf %202, %197 : vector<16x128xf32>
    %204 = arith.mulf %192, %203 : vector<16x128xf32>
    %205 = arith.subf %204, %202 : vector<16x128xf32>
    %206 = arith.addf %188, %205 : vector<16x128xf32>
    %cst_95 = arith.constant 2.000000e+00 : f32
    %207 = vector.broadcast %cst_95 : f32 to vector<16x128xf32>
    %208 = arith.cmpf oeq, %11, %207 : vector<16x128xf32>
    %209 = arith.extui %208 : vector<16x128xi1> to vector<16x128xi32>
    %210 = arith.sitofp %209 : vector<16x128xi32> to vector<16x128xf32>
    %c7 = arith.constant 7 : index
    %c0_96 = arith.constant 0 : index
    %c0_97 = arith.constant 0 : index
    %211 = vector.load %arg3[%c7, %c0_96, %c0_97] : memref<9x16x128xf32, #tpu.memory_space<vmem>>, vector<1x16x128xf32>
    %212 = vector.shape_cast %211 : vector<1x16x128xf32> to vector<16x128xf32>
    %213 = math.log %212 : vector<16x128xf32>
    %cst_98 = arith.constant -1.000000e+02 : f32
    %214 = vector.broadcast %cst_98 : f32 to vector<16x128xf32>
    %215 = arith.maximumf %213, %214 : vector<16x128xf32>
    %cst_99 = arith.constant 1.000000e+00 : f32
    %216 = vector.broadcast %cst_99 : f32 to vector<16x128xf32>
    %217 = arith.subf %216, %212 : vector<16x128xf32>
    %218 = math.log %217 : vector<16x128xf32>
    %cst_100 = arith.constant -1.000000e+02 : f32
    %219 = vector.broadcast %cst_100 : f32 to vector<16x128xf32>
    %220 = arith.maximumf %218, %219 : vector<16x128xf32>
    %221 = arith.subf %220, %215 : vector<16x128xf32>
    %222 = arith.mulf %210, %221 : vector<16x128xf32>
    %223 = arith.subf %222, %220 : vector<16x128xf32>
    %224 = arith.addf %206, %223 : vector<16x128xf32>
    %cst_101 = arith.constant 3.000000e+00 : f32
    %225 = vector.broadcast %cst_101 : f32 to vector<16x128xf32>
    %226 = arith.cmpf oeq, %11, %225 : vector<16x128xf32>
    %227 = arith.extui %226 : vector<16x128xi1> to vector<16x128xi32>
    %228 = arith.sitofp %227 : vector<16x128xi32> to vector<16x128xf32>
    %c8 = arith.constant 8 : index
    %c0_102 = arith.constant 0 : index
    %c0_103 = arith.constant 0 : index
    %229 = vector.load %arg3[%c8, %c0_102, %c0_103] : memref<9x16x128xf32, #tpu.memory_space<vmem>>, vector<1x16x128xf32>
    %230 = vector.shape_cast %229 : vector<1x16x128xf32> to vector<16x128xf32>
    %231 = math.log %230 : vector<16x128xf32>
    %cst_104 = arith.constant -1.000000e+02 : f32
    %232 = vector.broadcast %cst_104 : f32 to vector<16x128xf32>
    %233 = arith.maximumf %231, %232 : vector<16x128xf32>
    %cst_105 = arith.constant 1.000000e+00 : f32
    %234 = vector.broadcast %cst_105 : f32 to vector<16x128xf32>
    %235 = arith.subf %234, %230 : vector<16x128xf32>
    %236 = math.log %235 : vector<16x128xf32>
    %cst_106 = arith.constant -1.000000e+02 : f32
    %237 = vector.broadcast %cst_106 : f32 to vector<16x128xf32>
    %238 = arith.maximumf %236, %237 : vector<16x128xf32>
    %239 = arith.subf %238, %233 : vector<16x128xf32>
    %240 = arith.mulf %228, %239 : vector<16x128xf32>
    %241 = arith.subf %240, %238 : vector<16x128xf32>
    %242 = arith.addf %224, %241 : vector<16x128xf32>
    %c0_107 = arith.constant 0 : index
    %c0_108 = arith.constant 0 : index
    %243 = vector.load %arg10[%c0_107, %c0_108] : memref<16x128xf32, #tpu.memory_space<vmem>>, vector<16x128xf32>
    %244 = arith.mulf %5, %242 : vector<16x128xf32>
    %245 = arith.addf %243, %244 : vector<16x128xf32>
    %c0_109 = arith.constant 0 : index
    %c0_110 = arith.constant 0 : index
    %246 = vector.load %arg10[%c0_109, %c0_110] : memref<16x128xf32, #tpu.memory_space<vmem>>, vector<16x128xf32>
    tpu.vector_store %arg10[%c0_109, %c0_110], %245 {strides = array<i32>} : memref<16x128xf32, #tpu.memory_space<vmem>>, vector<16x128xf32>,
    %c0_i32_111 = arith.constant 0 : i32
    %247 = arith.cmpi eq, %arg1, %c0_i32_111 : i32
    %248 = arith.extui %247 : i1 to i32
    %c0_i32_112 = arith.constant 0 : i32
    %249 = arith.cmpi ne, %248, %c0_i32_112 : i32
    scf.if %249 {
      %250 = tpu.iota {dimensions = array<i32: 0>} : vector<8x128xi32>
      %cst_113 = arith.constant 0.000000e+00 : f32
      %251 = vector.broadcast %cst_113 : f32 to vector<8x128xf32>
      %c0_i32_114 = arith.constant 0 : i32
      %252 = vector.broadcast %c0_i32_114 : i32 to vector<8x128xi32>
      %253 = arith.cmpi eq, %250, %252 : vector<8x128xi32>
      %c0_115 = arith.constant 0 : index
      %c0_116 = arith.constant 0 : index
      %254 = vector.load %arg7[%c0_115, %c0_116] : memref<16x128xf32, #tpu.memory_space<vmem>>, vector<16x128xf32>
      %cst_117 = arith.constant dense<0.000000e+00> : vector<128xf32>
      %255 = vector.multi_reduction <add>, %254, %cst_117 [0] : vector<16x128xf32> to vector<128xf32>
      %256 = vector.shape_cast %255 : vector<128xf32> to vector<1x128xf32>
      %257 = vector.shape_cast %256 : vector<1x128xf32> to vector<1x128xf32>
      %258 = vector.broadcast %257 : vector<1x128xf32> to vector<8x128xf32>
      %259 = arith.select %253, %258, %251 : vector<8x128xi1>, vector<8x128xf32>
      %c1_i32_118 = arith.constant 1 : i32
      %260 = vector.broadcast %c1_i32_118 : i32 to vector<8x128xi32>
      %261 = arith.cmpi eq, %250, %260 : vector<8x128xi32>
      %c0_119 = arith.constant 0 : index
      %c0_120 = arith.constant 0 : index
      %262 = vector.load %arg8[%c0_119, %c0_120] : memref<16x128xf32, #tpu.memory_space<vmem>>, vector<16x128xf32>
      %cst_121 = arith.constant dense<0.000000e+00> : vector<128xf32>
      %263 = vector.multi_reduction <add>, %262, %cst_121 [0] : vector<16x128xf32> to vector<128xf32>
      %264 = vector.shape_cast %263 : vector<128xf32> to vector<1x128xf32>
      %265 = vector.shape_cast %264 : vector<1x128xf32> to vector<1x128xf32>
      %266 = vector.broadcast %265 : vector<1x128xf32> to vector<8x128xf32>
      %267 = arith.select %261, %266, %259 : vector<8x128xi1>, vector<8x128xf32>
      %c2_i32_122 = arith.constant 2 : i32
      %268 = vector.broadcast %c2_i32_122 : i32 to vector<8x128xi32>
      %269 = arith.cmpi eq, %250, %268 : vector<8x128xi32>
      %c0_123 = arith.constant 0 : index
      %c0_124 = arith.constant 0 : index
      %270 = vector.load %arg9[%c0_123, %c0_124] : memref<16x128xf32, #tpu.memory_space<vmem>>, vector<16x128xf32>
      %cst_125 = arith.constant dense<0.000000e+00> : vector<128xf32>
      %271 = vector.multi_reduction <add>, %270, %cst_125 [0] : vector<16x128xf32> to vector<128xf32>
      %272 = vector.shape_cast %271 : vector<128xf32> to vector<1x128xf32>
      %273 = vector.shape_cast %272 : vector<1x128xf32> to vector<1x128xf32>
      %274 = vector.broadcast %273 : vector<1x128xf32> to vector<8x128xf32>
      %275 = arith.select %269, %274, %267 : vector<8x128xi1>, vector<8x128xf32>
      %c3_i32_126 = arith.constant 3 : i32
      %276 = vector.broadcast %c3_i32_126 : i32 to vector<8x128xi32>
      %277 = arith.cmpi eq, %250, %276 : vector<8x128xi32>
      %c0_127 = arith.constant 0 : index
      %c0_128 = arith.constant 0 : index
      %278 = vector.load %arg10[%c0_127, %c0_128] : memref<16x128xf32, #tpu.memory_space<vmem>>, vector<16x128xf32>
      %cst_129 = arith.constant dense<0.000000e+00> : vector<128xf32>
      %279 = vector.multi_reduction <add>, %278, %cst_129 [0] : vector<16x128xf32> to vector<128xf32>
      %280 = vector.shape_cast %279 : vector<128xf32> to vector<1x128xf32>
      %281 = vector.shape_cast %280 : vector<1x128xf32> to vector<1x128xf32>
      %282 = vector.broadcast %281 : vector<1x128xf32> to vector<8x128xf32>
      %283 = arith.select %277, %282, %275 : vector<8x128xi1>, vector<8x128xf32>
      %c0_130 = arith.constant 0 : index
      %c0_131 = arith.constant 0 : index
      %c0_132 = arith.constant 0 : index
      %284 = vector.load %arg6[%c0_130, %c0_131, %c0_132] : memref<1x8x128xf32, #tpu.memory_space<vmem>>, vector<1x8x128xf32>
      %285 = vector.shape_cast %284 : vector<1x8x128xf32> to vector<8x128xf32>
      %286 = vector.shape_cast %283 : vector<8x128xf32> to vector<1x8x128xf32>
      tpu.vector_store %arg6[%c0_130, %c0_131, %c0_132], %286 {strides = array<i32>} : memref<1x8x128xf32, #tpu.memory_space<vmem>>, vector<1x8x128xf32>,
    } else {
    }
    return
  }
  func.func @transform_0(%arg0: i32, %arg1: i32, %arg2: memref<3xi32, #tpu.memory_space<smem>>) -> (i32, i32, i32) {
    %c1_i32 = arith.constant 1 : i32
    %0 = arith.muli %arg1, %c1_i32 : i32
    %1 = arith.addi %0, %arg0 : i32
    %c0_i32 = arith.constant 0 : i32
    %c0_i32_0 = arith.constant 0 : i32
    %c0_i32_1 = arith.constant 0 : i32
    return %c0_i32, %1, %c0_i32_0 : i32, i32, i32
  }
  func.func @transform_1(%arg0: i32, %arg1: i32, %arg2: memref<3xi32, #tpu.memory_space<smem>>) -> (i32, i32, i32) {
    %c1_i32 = arith.constant 1 : i32
    %0 = arith.muli %arg1, %c1_i32 : i32
    %1 = arith.addi %0, %arg0 : i32
    %c0_i32 = arith.constant 0 : i32
    %c0_i32_0 = arith.constant 0 : i32
    %c0_i32_1 = arith.constant 0 : i32
    return %c0_i32, %1, %c0_i32_0 : i32, i32, i32
  }
  func.func @transform_2(%arg0: i32, %arg1: i32, %arg2: memref<3xi32, #tpu.memory_space<smem>>) -> (i32, i32, i32) {
    %c1_i32 = arith.constant 1 : i32
    %0 = arith.muli %arg1, %c1_i32 : i32
    %1 = arith.addi %0, %arg0 : i32
    %c0_i32 = arith.constant 0 : i32
    %c0_i32_0 = arith.constant 0 : i32
    %c0_i32_1 = arith.constant 0 : i32
    return %c0_i32, %1, %c0_i32_0 : i32, i32, i32
  }
  func.func @transform_3(%arg0: i32, %arg1: i32, %arg2: memref<3xi32, #tpu.memory_space<smem>>) -> (i32, i32, i32) {
    %c0_i32 = arith.constant 0 : i32
    %c0_i32_0 = arith.constant 0 : i32
    %c0_i32_1 = arith.constant 0 : i32
    return %arg0, %c0_i32, %c0_i32_0 : i32, i32, i32
  }
}

</mosaic_0001>

<llo_original>
// kernel: _lambda_.3
$region0: #{_lambda_.3}
  #allocation0 [shape = 'u32[]', space=smem, size = 0x4, offset = 0x4, fixed_abs, tag = 'smem constant byte address 0x4 - core index']
  #allocation1 [shape = 'u32[72,128]{1,0:T(1,128)}', space=vmem, size = 0x9000, scoped, tag = 'internal scratch']
  #allocation2 [shape = 'f32[16,128]{1,0:T(8,128)}', space=vmem, size = 0x2000, scoped, tag = 'scratch operand']
  #allocation3 [shape = 'f32[16,128]{1,0:T(8,128)}', space=vmem, size = 0x2000, scoped, tag = 'scratch operand']
  #allocation4 [shape = 'f32[16,128]{1,0:T(8,128)}', space=vmem, size = 0x2000, scoped, tag = 'scratch operand']
  #allocation5 [shape = 'f32[16,128]{1,0:T(8,128)}', space=vmem, size = 0x2000, scoped, tag = 'scratch operand']
  #allocation6 [shape = 's32[1]{0}', space=sflag, size = 0x4, scoped, tag = 'scoped memory for _lambda_.3']
  #allocation7 [shape = 'u8[512]{0}', space=smem, size = 0x200, scoped, tag = 'prefetched SMEM operand 0']
  %s0 = inlined_call_operand.vmem [shape: s32[3], index: 0, kind: input, shape index: {}]
  %s1 = inlined_call_operand.vmem [shape: f32[9,16,128], index: 1, kind: input, shape index: {}]
  %s2 = inlined_call_operand.vmem [shape: f32[4,16,128], index: 2, kind: input, shape index: {}]
  %s3 = inlined_call_operand.vmem [shape: bf16[3,16,128], index: 3, kind: input, shape index: {}]
  %s4 = inlined_call_operand.vmem [shape: f32[1,8,128], index: 4, kind: output, shape index: {}]
  %s5 = sld [smem:[#allocation0]]
  $region30: #{_lambda_.3} parent=0
    _
  %s7 = ssub.s32 1, %s5
  %s8 = scalar_select 0, %s7, %s5
  %s10 = sshll.u32 %s0, 4
  %s11 = int_to_ptr.vmem [resolvable:$true] %s10
  %13 = dma.vmem_to_smem %s11, 16, [#allocation7], [#allocation6]
  %15 = dma.done [#allocation6], 16
  %16 = sfence
  // Predicated region
  $region2: #{_lambda_.3} parent=0 // pred_check
    _
  $region3: #{_lambda_.3} parent=0 // pred_check_branch
    %18 = sbr.rel (0) target = $region5
  $region4: #{_lambda_.3} parent=0 // pred_region
    %s19 = sadd.s32 0, 0
    %s20 = smul.u32 2, %s19
    %p21 = scmp.lt.s32.totalorder %s20, 1
    %s22 = scalar_select %p21, %s20, 1
    %s23 = smul.addr %s22, 8
    %s24 = scalar_lea.vmem %s1, %s23
    %s25 = sadd.s32 0, 0
    %s26 = smul.u32 2, %s25
  $region5: #{_lambda_.3} parent=0 // pred_fallthru
    _
  // Predicated region
  $region6: #{_lambda_.3} parent=0 // pred_check
    _
  $region7: #{_lambda_.3} parent=0 // pred_check_branch
    %28 = sbr.rel (0) target = $region9
  $region8: #{_lambda_.3} parent=0 // pred_region
    %s29 = sadd.s32 0, 0
    %s30 = smul.u32 2, %s29
    %p31 = scmp.lt.s32.totalorder %s30, 1
    %s32 = scalar_select %p31, %s30, 1
    %s33 = smul.addr %s32, 8
    %s34 = scalar_lea.vmem %s2, %s33
    %s35 = sadd.s32 0, 0
    %s36 = smul.u32 2, %s35
  $region9: #{_lambda_.3} parent=0 // pred_fallthru
    _
  // Predicated region
  $region10: #{_lambda_.3} parent=0 // pred_check
    _
  $region11: #{_lambda_.3} parent=0 // pred_check_branch
    %38 = sbr.rel (0) target = $region13
  $region12: #{_lambda_.3} parent=0 // pred_region
    %s39 = sadd.s32 0, 0
    %s40 = smul.u32 2, %s39
    %p41 = scmp.lt.s32.totalorder %s40, 1
    %s42 = scalar_select %p41, %s40, 1
    %s43 = smul.addr %s42, 4
    %s44 = scalar_lea.vmem %s3, %s43
    %s45 = sadd.s32 0, 0
    %s46 = smul.u32 2, %s45
  $region13: #{_lambda_.3} parent=0 // pred_fallthru
    _
  %s47 = sadd.s32 0, 0
  %s48 = smul.u32 2, %s47
  %p49 = scmp.lt.s32.totalorder %s48, 1
  %s50 = scalar_select %p49, %s48, 1
  %s51 = smul.addr %s50, 8
  %s52 = scalar_lea.vmem %s1, %s51
  %s53 = sadd.s32 0, 0
  %s54 = smul.u32 2, %s53
  %p55 = scmp.lt.s32.totalorder %s54, 1
  %s56 = scalar_select %p55, %s54, 1
  %s57 = smul.addr %s56, 8
  %s58 = scalar_lea.vmem %s2, %s57
  %s59 = sadd.s32 0, 0
  %s60 = smul.u32 2, %s59
  %p61 = scmp.lt.s32.totalorder %s60, 1
  %s62 = scalar_select %p61, %s60, 1
  %s63 = smul.addr %s62, 4
  %s64 = scalar_lea.vmem %s3, %s63
  %s65 = sadd.s32 0, 0
  %s66 = smul.u32 2, %s65
  %p67 = scmp.lt.s32.totalorder %s66, 1
  %s68 = scalar_select %p67, %s66, 1
  %s69 = smul.addr %s68, 8
  %s70 = scalar_lea.vmem %s1, %s69
  %s71 = sadd.s32 0, 0
  %s72 = smul.u32 2, %s71
  %s73 = sadd.s32 0, 0
  %s74 = smul.u32 2, %s73
  %p75 = scmp.lt.s32.totalorder %s74, 1
  %s76 = scalar_select %p75, %s74, 1
  %s77 = smul.addr %s76, 8
  %s78 = scalar_lea.vmem %s2, %s77
  %s79 = sadd.s32 0, 0
  %s80 = smul.u32 2, %s79
  %s81 = sadd.s32 0, 0
  %s82 = smul.u32 2, %s81
  %p83 = scmp.lt.s32.totalorder %s82, 1
  %s84 = scalar_select %p83, %s82, 1
  %s85 = smul.addr %s84, 4
  %s86 = scalar_lea.vmem %s3, %s85
  %s87 = sadd.s32 0, 0
  %s88 = smul.u32 2, %s87
  %p89 = scmp.eq.s32.totalorder 0, 0
  // Predicated region
  $region14: #{_lambda_.3} parent=0 // pred_check
    %p90 = pneg %p89
  $region15: #{_lambda_.3} parent=0 // pred_check_branch
    %92 = sbr.rel (%p90) target = $region17
  $region16: #{_lambda_.3} parent=0 // pred_region
    %93 = vst [vmem:[#allocation2] sm:$0xff] 0.0
    %94 = vst [vmem:[#allocation2 + $0x8] sm:$0xff] 0.0
    %95 = vst [vmem:[#allocation3] sm:$0xff] 0.0
    %96 = vst [vmem:[#allocation3 + $0x8] sm:$0xff] 0.0
    %97 = vst [vmem:[#allocation4] sm:$0xff] 0.0
    %98 = vst [vmem:[#allocation4 + $0x8] sm:$0xff] 0.0
    %99 = vst [vmem:[#allocation5] sm:$0xff] 0.0
    %100 = vst [vmem:[#allocation5 + $0x8] sm:$0xff] 0.0
  $region17: #{_lambda_.3} parent=0 // pred_fallthru
    _
  %v101 = vld [vmem:[%s86] sm:$0xf]
  %v102 = vld [vmem:[%s86 + $0x4] sm:$0xf]
  %v103 = vunpack.c.l.bf16 %v101
  %v104 = vunpack.c.l.bf16 %v102
  %s105 = scalar_lea.vmem %s86, 8
  %v106 = vld [vmem:[%s105] sm:$0xf]
  %v107 = vld [vmem:[%s105 + $0x4] sm:$0xf]
  %v108 = vunpack.c.l.bf16 %v106
  %v109 = vunpack.c.l.bf16 %v107
  %s110 = scalar_lea.vmem %s86, 16
  %v111 = vld [vmem:[%s110] sm:$0xf]
  %v112 = vld [vmem:[%s110 + $0x4] sm:$0xf]
  %v113 = vunpack.c.l.bf16 %v111
  %v114 = vunpack.c.l.bf16 %v112
  %s115 = sadd.s32 0, 0
  %s116 = smul.u32 %s115, 3
  %s117 = sld [smem:[#allocation7 + %s116]]
  %s118 = sadd.s32 %s116, 1
  %s119 = sld [smem:[#allocation7 + %s118]]
  %s120 = sadd.s32 %s116, 2
  %s121 = sld [smem:[#allocation7 + %s120]]
  %v122 = vlaneseq
  %v123 = vshrl.u32 %v122, 7
  %v124 = vadd.s32 %v123, 8
  %v125 = vmul.u32 %v123, 128
  %v126 = vmul.u32 %v124, 128
  %v127 = vlaneseq
  %v128 = vand.u32 %v127, 127
  %v129 = vadd.s32 %v125, %v128
  %v130 = vadd.s32 %v126, %v128
  %v131 = vstv %s117
  %v132 = vadd.s32 %v131, %v129
  %v133 = vadd.s32 %v131, %v130
  %v134 = vcvt.s32.f32 %v132
  %v135 = vcvt.s32.f32 %v133
  %v136 = vadd.f32 %v134, 0.5
  %v137 = vadd.f32 %v135, 0.5
  %v138 = vmul.f32 %v136, 0.25
  %v139 = vmul.f32 %v137, 0.25
  %v140 = vfloor.f32 %v138
  %v141 = vfloor.f32 %v139
  %v142 = vmul.f32 %v140, 4.0
  %v143 = vmul.f32 %v141, 4.0
  %v144 = vsub.f32 %v134, %v142
  %v145 = vsub.f32 %v135, %v143
  %s146 = scvt.s32.f32 %s119
  %v147 = vstv %s146
  %v148 = vadd.f32 %v147, %v140
  %v149 = vadd.f32 %v147, %v141
  %v150 = vadd.f32 %v148, 0.5
  %v151 = vadd.f32 %v149, 0.5
  %v152 = vmul.f32 %v150, 0.25
  %v153 = vmul.f32 %v151, 0.25
  %v154 = vfloor.f32 %v152
  %v155 = vfloor.f32 %v153
  %v156 = vmul.f32 %v154, 4.0
  %v157 = vmul.f32 %v155, 4.0
  %v158 = vsub.f32 %v148, %v156
  %v159 = vsub.f32 %v149, %v157
  %s160 = scvt.s32.f32 %s121
  %v161 = vstv %s160
  %v162 = vadd.f32 %v161, %v154
  %v163 = vadd.f32 %v161, %v155
  %v164 = vadd.f32 %v162, 0.5
  %v165 = vadd.f32 %v163, 0.5
  %v166 = vmul.f32 %v164, 0.33333334
  %v167 = vmul.f32 %v165, 0.33333334
  %v168 = vfloor.f32 %v166
  %v169 = vfloor.f32 %v167
  %v170 = vmul.f32 %v168, 3.0
  %v171 = vmul.f32 %v169, 3.0
  %v172 = vsub.f32 %v162, %v170
  %v173 = vsub.f32 %v163, %v171
  %vm174 = vcmp.eq.f32.partialorder %v172, 1.0
  %vm175 = vcmp.eq.f32.partialorder %v173, 1.0
  %v176 = vsel %vm174, 0.5555556, 1.0
  %v177 = vsel %vm175, 0.5555556, 1.0
  %v178 = vsel %vm174, 0.45454547, 0.8333333
  %v179 = vsel %vm175, 0.45454547, 0.8333333
  %vm180 = vcmp.eq.f32.partialorder %v172, 2.0
  %vm181 = vcmp.eq.f32.partialorder %v173, 2.0
  %v182 = vsel %vm180, 0.4, %v176
  %v183 = vsel %vm181, 0.4, %v177
  %v184 = vsel %vm180, 0.33333334, %v178
  %v185 = vsel %vm181, 0.33333334, %v179
  %v186 = vld [vmem:[%s70] sm:$0xff]
  %v187 = vld [vmem:[%s70 + $0x8] sm:$0xff]
  %v188 = vmul.f32 %v186, 4.0
  %v189 = vmul.f32 %v187, 4.0
  %v190 = vsub.f32 %v188, %v144
  %v191 = vsub.f32 %v189, %v145
  %v192 = vmax.f32 %v190, 1e-05
  %v193 = vmax.f32 %v191, 1e-05
  %v194 = vmin.f32 %v192, 0.99999
  %v195 = vmin.f32 %v193, 0.99999
  %v196 = vsub.f32 1.0, %v194
  %v197 = vsub.f32 1.0, %v195
  %v198 = vrcp.pop %v196
  %v199 = vrcp.pop %v197
  %v200 = vmul.f32 %v194, %v198
  %v201 = vmul.f32 %v195, %v199
  %v202 = vadd.f32 %v200, 1e-05
  %v203 = vadd.f32 %v201, 1e-05
  %v204 = vlog2.pop %v202
  %v205 = vmul.f32 %v204, 0.6931472
  %v206 = vlog2.pop %v203
  %v207 = vmul.f32 %v206, 0.6931472
  %s208 = scalar_lea.vmem %s70, 16
  %v209 = vld [vmem:[%s208] sm:$0xff]
  %v210 = vld [vmem:[%s208 + $0x8] sm:$0xff]
  %v211 = vmul.f32 %v209, 4.0
  %v212 = vmul.f32 %v210, 4.0
  %v213 = vsub.f32 %v211, %v158
  %v214 = vsub.f32 %v212, %v159
  %v215 = vmax.f32 %v213, 1e-05
  %v216 = vmax.f32 %v214, 1e-05
  %v217 = vmin.f32 %v215, 0.99999
  %v218 = vmin.f32 %v216, 0.99999
  %v219 = vsub.f32 1.0, %v217
  %v220 = vsub.f32 1.0, %v218
  %v221 = vrcp.pop %v219
  %v222 = vrcp.pop %v220
  %v223 = vmul.f32 %v217, %v221
  %v224 = vmul.f32 %v218, %v222
  %v225 = vadd.f32 %v223, 1e-05
  %v226 = vadd.f32 %v224, 1e-05
  %v227 = vlog2.pop %v225
  %v228 = vmul.f32 %v227, 0.6931472
  %v229 = vlog2.pop %v226
  %v230 = vmul.f32 %v229, 0.6931472
  %s231 = scalar_lea.vmem %s70, 32
  %v232 = vld [vmem:[%s231] sm:$0xff]
  %v233 = vld [vmem:[%s231 + $0x8] sm:$0xff]
  %v234 = vmul.f32 %v232, 4.0
  %v235 = vmul.f32 %v233, 4.0
  %v236 = vmul.f32 %v234, %v182
  %v237 = vmul.f32 %v235, %v183
  %v238 = vmax.f32 %v236, 1e-05
  %v239 = vmax.f32 %v237, 1e-05
  %v240 = vlog2.pop %v238
  %v241 = vmul.f32 %v240, 0.6931472
  %v242 = vlog2.pop %v239
  %v243 = vmul.f32 %v242, 0.6931472
  %s244 = scalar_lea.vmem %s70, 48
  %v245 = vld [vmem:[%s244] sm:$0xff]
  %v246 = vld [vmem:[%s244 + $0x8] sm:$0xff]
  %v247 = vmul.f32 %v245, 4.0
  %v248 = vmul.f32 %v246, 4.0
  %v249 = vmul.f32 %v247, %v184
  %v250 = vmul.f32 %v248, %v185
  %v251 = vmax.f32 %v249, 1e-05
  %v252 = vmax.f32 %v250, 1e-05
  %v253 = vlog2.pop %v251
  %v254 = vmul.f32 %v253, 0.6931472
  %v255 = vlog2.pop %v252
  %v256 = vmul.f32 %v255, 0.6931472
  %v257 = vld [vmem:[%s78] sm:$0xff]
  %v258 = vld [vmem:[%s78 + $0x8] sm:$0xff]
  %v259 = vsub.f32 %v205, %v257
  %v260 = vsub.f32 %v207, %v258
  %v261 = vmul.f32 %v259, %v259
  %v262 = vmul.f32 %v260, %v260
  %s263 = scalar_lea.vmem %s78, 16
  %v264 = vld [vmem:[%s263] sm:$0xff]
  %v265 = vld [vmem:[%s263 + $0x8] sm:$0xff]
  %v266 = vsub.f32 %v228, %v264
  %v267 = vsub.f32 %v230, %v265
  %v268 = vmul.f32 %v266, %v266
  %v269 = vmul.f32 %v267, %v267
  %v270 = vadd.f32 %v261, %v268
  %v271 = vadd.f32 %v262, %v269
  %s272 = scalar_lea.vmem %s78, 32
  %v273 = vld [vmem:[%s272] sm:$0xff]
  %v274 = vld [vmem:[%s272 + $0x8] sm:$0xff]
  %v275 = vsub.f32 %v241, %v273
  %v276 = vsub.f32 %v243, %v274
  %v277 = vmul.f32 %v275, %v275
  %v278 = vmul.f32 %v276, %v276
  %v279 = vadd.f32 %v270, %v277
  %v280 = vadd.f32 %v271, %v278
  %s281 = scalar_lea.vmem %s78, 48
  %v282 = vld [vmem:[%s281] sm:$0xff]
  %v283 = vld [vmem:[%s281 + $0x8] sm:$0xff]
  %v284 = vsub.f32 %v254, %v282
  %v285 = vsub.f32 %v256, %v283
  %v286 = vmul.f32 %v284, %v284
  %v287 = vmul.f32 %v285, %v285
  %v288 = vadd.f32 %v279, %v286
  %v289 = vadd.f32 %v280, %v287
  %v290 = vld [vmem:[#allocation2] sm:$0xff]
  %v291 = vld [vmem:[#allocation2 + $0x8] sm:$0xff]
  %v292 = vmul.f32 %v103, %v288
  %v293 = vmul.f32 %v104, %v289
  %v294 = vadd.f32 %v290, %v292
  %v295 = vadd.f32 %v291, %v293
  %296 = vst [vmem:[#allocation2] sm:$0xff] %v294
  %297 = vst [vmem:[#allocation2 + $0x8] sm:$0xff] %v295
  %s298 = scalar_lea.vmem %s70, 64
  %v299 = vld [vmem:[%s298] sm:$0xff]
  %v300 = vld [vmem:[%s298 + $0x8] sm:$0xff]
  %v301 = vld [vmem:[#allocation3] sm:$0xff]
  %v302 = vld [vmem:[#allocation3 + $0x8] sm:$0xff]
  %v303 = vlog2.pop %v299
  %v304 = vmul.f32 %v303, 0.6931472
  %v305 = vlog2.pop %v300
  %v306 = vmul.f32 %v305, 0.6931472
  %v307 = vsub.f32 0.0, %v304
  %v308 = vsub.f32 0.0, %v306
  %v309 = vmin.f32 %v307, 100.0
  %v310 = vmin.f32 %v308, 100.0
  %v311 = vmul.f32 %v103, %v309
  %v312 = vmul.f32 %v104, %v310
  %v313 = vadd.f32 %v301, %v311
  %v314 = vadd.f32 %v302, %v312
  %315 = vst [vmem:[#allocation3] sm:$0xff] %v313
  %316 = vst [vmem:[#allocation3 + $0x8] sm:$0xff] %v314
  %v317 = vld [vmem:[#allocation4] sm:$0xff]
  %v318 = vld [vmem:[#allocation4 + $0x8] sm:$0xff]
  %v319 = vsub.f32 1.0, %v299
  %v320 = vsub.f32 1.0, %v300
  %v321 = vlog2.pop %v319
  %v322 = vmul.f32 %v321, 0.6931472
  %v323 = vlog2.pop %v320
  %v324 = vmul.f32 %v323, 0.6931472
  %v325 = vsub.f32 0.0, %v322
  %v326 = vsub.f32 0.0, %v324
  %v327 = vmin.f32 %v325, 100.0
  %v328 = vmin.f32 %v326, 100.0
  %v329 = vmul.f32 %v108, %v327
  %v330 = vmul.f32 %v109, %v328
  %v331 = vadd.f32 %v317, %v329
  %v332 = vadd.f32 %v318, %v330
  %333 = vst [vmem:[#allocation4] sm:$0xff] %v331
  %334 = vst [vmem:[#allocation4 + $0x8] sm:$0xff] %v332
  %vm335 = vcmp.eq.f32.partialorder %v113, 0.0
  %vm336 = vcmp.eq.f32.partialorder %v114, 0.0
  %v337 = vsel %vm335, 1, 0
  %v338 = vsel %vm336, 1, 0
  %v339 = vcvt.s32.f32 %v337
  %v340 = vcvt.s32.f32 %v338
  %s341 = scalar_lea.vmem %s70, 80
  %v342 = vld [vmem:[%s341] sm:$0xff]
  %v343 = vld [vmem:[%s341 + $0x8] sm:$0xff]
  %v344 = vlog2.pop %v342
  %v345 = vmul.f32 %v344, 0.6931472
  %v346 = vlog2.pop %v343
  %v347 = vmul.f32 %v346, 0.6931472
  %v348 = vmax.f32 %v345, -100.0
  %v349 = vmax.f32 %v347, -100.0
  %v350 = vsub.f32 1.0, %v342
  %v351 = vsub.f32 1.0, %v343
  %v352 = vlog2.pop %v350
  %v353 = vmul.f32 %v352, 0.6931472
  %v354 = vlog2.pop %v351
  %v355 = vmul.f32 %v354, 0.6931472
  %v356 = vmax.f32 %v353, -100.0
  %v357 = vmax.f32 %v355, -100.0
  %v358 = vsub.f32 %v356, %v348
  %v359 = vsub.f32 %v357, %v349
  %v360 = vmul.f32 %v339, %v358
  %v361 = vmul.f32 %v340, %v359
  %v362 = vsub.f32 %v360, %v356
  %v363 = vsub.f32 %v361, %v357
  %v364 = vadd.f32 %v362, 0.0
  %v365 = vadd.f32 %v363, 0.0
  %vm366 = vcmp.eq.f32.partialorder %v113, 1.0
  %vm367 = vcmp.eq.f32.partialorder %v114, 1.0
  %v368 = vsel %vm366, 1, 0
  %v369 = vsel %vm367, 1, 0
  %v370 = vcvt.s32.f32 %v368
  %v371 = vcvt.s32.f32 %v369
  %s372 = scalar_lea.vmem %s70, 96
  %v373 = vld [vmem:[%s372] sm:$0xff]
  %v374 = vld [vmem:[%s372 + $0x8] sm:$0xff]
  %v375 = vlog2.pop %v373
  %v376 = vmul.f32 %v375, 0.6931472
  %v377 = vlog2.pop %v374
  %v378 = vmul.f32 %v377, 0.6931472
  %v379 = vmax.f32 %v376, -100.0
  %v380 = vmax.f32 %v378, -100.0
  %v381 = vsub.f32 1.0, %v373
  %v382 = vsub.f32 1.0, %v374
  %v383 = vlog2.pop %v381
  %v384 = vmul.f32 %v383, 0.6931472
  %v385 = vlog2.pop %v382
  %v386 = vmul.f32 %v385, 0.6931472
  %v387 = vmax.f32 %v384, -100.0
  %v388 = vmax.f32 %v386, -100.0
  %v389 = vsub.f32 %v387, %v379
  %v390 = vsub.f32 %v388, %v380
  %v391 = vmul.f32 %v370, %v389
  %v392 = vmul.f32 %v371, %v390
  %v393 = vsub.f32 %v391, %v387
  %v394 = vsub.f32 %v392, %v388
  %v395 = vadd.f32 %v364, %v393
  %v396 = vadd.f32 %v365, %v394
  %vm397 = vcmp.eq.f32.partialorder %v113, 2.0
  %vm398 = vcmp.eq.f32.partialorder %v114, 2.0
  %v399 = vsel %vm397, 1, 0
  %v400 = vsel %vm398, 1, 0
  %v401 = vcvt.s32.f32 %v399
  %v402 = vcvt.s32.f32 %v400
  %s403 = scalar_lea.vmem %s70, 112
  %v404 = vld [vmem:[%s403] sm:$0xff]
  %v405 = vld [vmem:[%s403 + $0x8] sm:$0xff]
  %v406 = vlog2.pop %v404
  %v407 = vmul.f32 %v406, 0.6931472
  %v408 = vlog2.pop %v405
  %v409 = vmul.f32 %v408, 0.6931472
  %v410 = vmax.f32 %v407, -100.0
  %v411 = vmax.f32 %v409, -100.0
  %v412 = vsub.f32 1.0, %v404
  %v413 = vsub.f32 1.0, %v405
  %v414 = vlog2.pop %v412
  %v415 = vmul.f32 %v414, 0.6931472
  %v416 = vlog2.pop %v413
  %v417 = vmul.f32 %v416, 0.6931472
  %v418 = vmax.f32 %v415, -100.0
  %v419 = vmax.f32 %v417, -100.0
  %v420 = vsub.f32 %v418, %v410
  %v421 = vsub.f32 %v419, %v411
  %v422 = vmul.f32 %v401, %v420
  %v423 = vmul.f32 %v402, %v421
  %v424 = vsub.f32 %v422, %v418
  %v425 = vsub.f32 %v423, %v419
  %v426 = vadd.f32 %v395, %v424
  %v427 = vadd.f32 %v396, %v425
  %vm428 = vcmp.eq.f32.partialorder %v113, 3.0
  %vm429 = vcmp.eq.f32.partialorder %v114, 3.0
  %v430 = vsel %vm428, 1, 0
  %v431 = vsel %vm429, 1, 0
  %v432 = vcvt.s32.f32 %v430
  %v433 = vcvt.s32.f32 %v431
  %s434 = scalar_lea.vmem %s70, 128
  %v435 = vld [vmem:[%s434] sm:$0xff]
  %v436 = vld [vmem:[%s434 + $0x8] sm:$0xff]
  %v437 = vlog2.pop %v435
  %v438 = vmul.f32 %v437, 0.6931472
  %v439 = vlog2.pop %v436
  %v440 = vmul.f32 %v439, 0.6931472
  %v441 = vmax.f32 %v438, -100.0
  %v442 = vmax.f32 %v440, -100.0
  %v443 = vsub.f32 1.0, %v435
  %v444 = vsub.f32 1.0, %v436
  %v445 = vlog2.pop %v443
  %v446 = vmul.f32 %v445, 0.6931472
  %v447 = vlog2.pop %v444
  %v448 = vmul.f32 %v447, 0.6931472
  %v449 = vmax.f32 %v446, -100.0
  %v450 = vmax.f32 %v448, -100.0
  %v451 = vsub.f32 %v449, %v441
  %v452 = vsub.f32 %v450, %v442
  %v453 = vmul.f32 %v432, %v451
  %v454 = vmul.f32 %v433, %v452
  %v455 = vsub.f32 %v453, %v449
  %v456 = vsub.f32 %v454, %v450
  %v457 = vadd.f32 %v426, %v455
  %v458 = vadd.f32 %v427, %v456
  %v459 = vld [vmem:[#allocation5] sm:$0xff]
  %v460 = vld [vmem:[#allocation5 + $0x8] sm:$0xff]
  %v461 = vmul.f32 %v103, %v457
  %v462 = vmul.f32 %v104, %v458
  %v463 = vadd.f32 %v459, %v461
  %v464 = vadd.f32 %v460, %v462
  %465 = vst [vmem:[#allocation5] sm:$0xff] %v463
  %466 = vst [vmem:[#allocation5 + $0x8] sm:$0xff] %v464
  // Predicated region
  $region18: #{_lambda_.3} parent=0 // pred_check
    %p467 = pneg %p89
  $region19: #{_lambda_.3} parent=0 // pred_check_branch
    %469 = sbr.rel (%p467) target = $region21
  $region20: #{_lambda_.3} parent=0 // pred_region
    %vm470 = vcmp.eq.s32.totalorder %v123, 0
    %v471 = vld [vmem:[#allocation2] sm:$0xff]
    %v472 = vld [vmem:[#allocation2 + $0x8] sm:$0xff]
    %v473 = vadd.f32 %v471, %v472
    %v474 = vrot.slane %v473, 4
    %v475 = vadd.f32 %v473, %v474
    %v476 = vrot.slane %v475, 2
    %v477 = vadd.f32 %v475, %v476
    %v478 = vrot.slane %v477, 1
    %v479 = vadd.f32 %v477, %v478
    %v480 = vsel %vm470, %v479, 0.0
    %vm481 = vcmp.eq.s32.totalorder %v123, 1
    %v482 = vld [vmem:[#allocation3] sm:$0xff]
    %v483 = vld [vmem:[#allocation3 + $0x8] sm:$0xff]
    %v484 = vadd.f32 %v482, %v483
    %v485 = vrot.slane %v484, 4
    %v486 = vadd.f32 %v484, %v485
    %v487 = vrot.slane %v486, 2
    %v488 = vadd.f32 %v486, %v487
    %v489 = vrot.slane %v488, 1
    %v490 = vadd.f32 %v488, %v489
    %v491 = vsel %vm481, %v490, %v480
    %vm492 = vcmp.eq.s32.totalorder %v123, 2
    %v493 = vld [vmem:[#allocation4] sm:$0xff]
    %v494 = vld [vmem:[#allocation4 + $0x8] sm:$0xff]
    %v495 = vadd.f32 %v493, %v494
    %v496 = vrot.slane %v495, 4
    %v497 = vadd.f32 %v495, %v496
    %v498 = vrot.slane %v497, 2
    %v499 = vadd.f32 %v497, %v498
    %v500 = vrot.slane %v499, 1
    %v501 = vadd.f32 %v499, %v500
    %v502 = vsel %vm492, %v501, %v491
    %vm503 = vcmp.eq.s32.totalorder %v123, 3
    %v504 = vld [vmem:[#allocation5] sm:$0xff]
    %v505 = vld [vmem:[#allocation5 + $0x8] sm:$0xff]
    %v506 = vadd.f32 %v504, %v505
    %v507 = vrot.slane %v506, 4
    %v508 = vadd.f32 %v506, %v507
    %v509 = vrot.slane %v508, 2
    %v510 = vadd.f32 %v508, %v509
    %v511 = vrot.slane %v510, 1
    %v512 = vadd.f32 %v510, %v511
    %v513 = vsel %vm503, %v512, %v502
    %514 = vst [vmem:[%s4] sm:$0xff] %v513
  $region21: #{_lambda_.3} parent=0 // pred_fallthru
    _
  // Predicated region
  $region22: #{_lambda_.3} parent=0 // pred_check
    _
  $region23: #{_lambda_.3} parent=0 // pred_check_branch
    %516 = sbr.rel (0) target = $region25
  $region24: #{_lambda_.3} parent=0 // pred_region
    _
  $region25: #{_lambda_.3} parent=0 // pred_fallthru
    _
  // Predicated region
  $region26: #{_lambda_.3} parent=0 // pred_check
    _
  $region27: #{_lambda_.3} parent=0 // pred_check_branch
    %518 = sbr.rel (0) target = $region29
  $region28: #{_lambda_.3} parent=0 // pred_region
    _
  $region29: #{_lambda_.3} parent=0 // pred_fallthru
    _

// kernel: _lambda_.2
$region0: #{_lambda_.2}
  #allocation0 [shape = 'u32[]', space=smem, size = 0x4, offset = 0x4, fixed_abs, tag = 'smem constant byte address 0x4 - core index']
  #allocation1 [shape = 'u32[72,128]{1,0:T(1,128)}', space=vmem, size = 0x9000, scoped, tag = 'internal scratch']
  #allocation2 [shape = 'f32[16,128]{1,0:T(8,128)}', space=vmem, size = 0x2000, scoped, tag = 'scratch operand']
  #allocation3 [shape = 'f32[16,128]{1,0:T(8,128)}', space=vmem, size = 0x2000, scoped, tag = 'scratch operand']
  #allocation4 [shape = 'f32[16,128]{1,0:T(8,128)}', space=vmem, size = 0x2000, scoped, tag = 'scratch operand']
  #allocation5 [shape = 'f32[16,128]{1,0:T(8,128)}', space=vmem, size = 0x2000, scoped, tag = 'scratch operand']
  #allocation6 [shape = 's32[1]{0}', space=sflag, size = 0x4, scoped, tag = 'scoped memory for _lambda_.2']
  #allocation7 [shape = 'u8[512]{0}', space=smem, size = 0x200, scoped, tag = 'prefetched SMEM operand 0']
  %s0 = inlined_call_operand.vmem [shape: s32[3], index: 0, kind: input, shape index: {}]
  %s1 = inlined_call_operand.vmem [shape: f32[9,16,128], index: 1, kind: input, shape index: {}]
  %s2 = inlined_call_operand.vmem [shape: f32[4,16,128], index: 2, kind: input, shape index: {}]
  %s3 = inlined_call_operand.vmem [shape: bf16[3,16,128], index: 3, kind: input, shape index: {}]
  %s4 = inlined_call_operand.vmem [shape: f32[1,8,128], index: 4, kind: output, shape index: {}]
  %s5 = sld [smem:[#allocation0]]
  $region30: #{_lambda_.2} parent=0
    _
  %s7 = ssub.s32 1, %s5
  %s8 = scalar_select 0, %s7, %s5
  %s10 = sshll.u32 %s0, 4
  %s11 = int_to_ptr.vmem [resolvable:$true] %s10
  %13 = dma.vmem_to_smem %s11, 16, [#allocation7], [#allocation6]
  %15 = dma.done [#allocation6], 16
  %16 = sfence
  // Predicated region
  $region2: #{_lambda_.2} parent=0 // pred_check
    _
  $region3: #{_lambda_.2} parent=0 // pred_check_branch
    %18 = sbr.rel (0) target = $region5
  $region4: #{_lambda_.2} parent=0 // pred_region
    %s19 = sadd.s32 0, 0
    %s20 = smul.u32 2, %s19
    %p21 = scmp.lt.s32.totalorder %s20, 1
    %s22 = scalar_select %p21, %s20, 1
    %s23 = smul.addr %s22, 8
    %s24 = scalar_lea.vmem %s1, %s23
    %s25 = sadd.s32 0, 0
    %s26 = smul.u32 2, %s25
  $region5: #{_lambda_.2} parent=0 // pred_fallthru
    _
  // Predicated region
  $region6: #{_lambda_.2} parent=0 // pred_check
    _
  $region7: #{_lambda_.2} parent=0 // pred_check_branch
    %28 = sbr.rel (0) target = $region9
  $region8: #{_lambda_.2} parent=0 // pred_region
    %s29 = sadd.s32 0, 0
    %s30 = smul.u32 2, %s29
    %p31 = scmp.lt.s32.totalorder %s30, 1
    %s32 = scalar_select %p31, %s30, 1
    %s33 = smul.addr %s32, 8
    %s34 = scalar_lea.vmem %s2, %s33
    %s35 = sadd.s32 0, 0
    %s36 = smul.u32 2, %s35
  $region9: #{_lambda_.2} parent=0 // pred_fallthru
    _
  // Predicated region
  $region10: #{_lambda_.2} parent=0 // pred_check
    _
  $region11: #{_lambda_.2} parent=0 // pred_check_branch
    %38 = sbr.rel (0) target = $region13
  $region12: #{_lambda_.2} parent=0 // pred_region
    %s39 = sadd.s32 0, 0
    %s40 = smul.u32 2, %s39
    %p41 = scmp.lt.s32.totalorder %s40, 1
    %s42 = scalar_select %p41, %s40, 1
    %s43 = smul.addr %s42, 4
    %s44 = scalar_lea.vmem %s3, %s43
    %s45 = sadd.s32 0, 0
    %s46 = smul.u32 2, %s45
  $region13: #{_lambda_.2} parent=0 // pred_fallthru
    _
  %s47 = sadd.s32 0, 0
  %s48 = smul.u32 2, %s47
  %p49 = scmp.lt.s32.totalorder %s48, 1
  %s50 = scalar_select %p49, %s48, 1
  %s51 = smul.addr %s50, 8
  %s52 = scalar_lea.vmem %s1, %s51
  %s53 = sadd.s32 0, 0
  %s54 = smul.u32 2, %s53
  %p55 = scmp.lt.s32.totalorder %s54, 1
  %s56 = scalar_select %p55, %s54, 1
  %s57 = smul.addr %s56, 8
  %s58 = scalar_lea.vmem %s2, %s57
  %s59 = sadd.s32 0, 0
  %s60 = smul.u32 2, %s59
  %p61 = scmp.lt.s32.totalorder %s60, 1
  %s62 = scalar_select %p61, %s60, 1
  %s63 = smul.addr %s62, 4
  %s64 = scalar_lea.vmem %s3, %s63
  %s65 = sadd.s32 0, 0
  %s66 = smul.u32 2, %s65
  %p67 = scmp.lt.s32.totalorder %s66, 1
  %s68 = scalar_select %p67, %s66, 1
  %s69 = smul.addr %s68, 8
  %s70 = scalar_lea.vmem %s1, %s69
  %s71 = sadd.s32 0, 0
  %s72 = smul.u32 2, %s71
  %s73 = sadd.s32 0, 0
  %s74 = smul.u32 2, %s73
  %p75 = scmp.lt.s32.totalorder %s74, 1
  %s76 = scalar_select %p75, %s74, 1
  %s77 = smul.addr %s76, 8
  %s78 = scalar_lea.vmem %s2, %s77
  %s79 = sadd.s32 0, 0
  %s80 = smul.u32 2, %s79
  %s81 = sadd.s32 0, 0
  %s82 = smul.u32 2, %s81
  %p83 = scmp.lt.s32.totalorder %s82, 1
  %s84 = scalar_select %p83, %s82, 1
  %s85 = smul.addr %s84, 4
  %s86 = scalar_lea.vmem %s3, %s85
  %s87 = sadd.s32 0, 0
  %s88 = smul.u32 2, %s87
  %p89 = scmp.eq.s32.totalorder 0, 0
  // Predicated region
  $region14: #{_lambda_.2} parent=0 // pred_check
    %p90 = pneg %p89
  $region15: #{_lambda_.2} parent=0 // pred_check_branch
    %92 = sbr.rel (%p90) target = $region17
  $region16: #{_lambda_.2} parent=0 // pred_region
    %93 = vst [vmem:[#allocation2] sm:$0xff] 0.0
    %94 = vst [vmem:[#allocation2 + $0x8] sm:$0xff] 0.0
    %95 = vst [vmem:[#allocation3] sm:$0xff] 0.0
    %96 = vst [vmem:[#allocation3 + $0x8] sm:$0xff] 0.0
    %97 = vst [vmem:[#allocation4] sm:$0xff] 0.0
    %98 = vst [vmem:[#allocation4 + $0x8] sm:$0xff] 0.0
    %99 = vst [vmem:[#allocation5] sm:$0xff] 0.0
    %100 = vst [vmem:[#allocation5 + $0x8] sm:$0xff] 0.0
  $region17: #{_lambda_.2} parent=0 // pred_fallthru
    _
  %v101 = vld [vmem:[%s86] sm:$0xf]
  %v102 = vld [vmem:[%s86 + $0x4] sm:$0xf]
  %v103 = vunpack.c.l.bf16 %v101
  %v104 = vunpack.c.l.bf16 %v102
  %s105 = scalar_lea.vmem %s86, 8
  %v106 = vld [vmem:[%s105] sm:$0xf]
  %v107 = vld [vmem:[%s105 + $0x4] sm:$0xf]
  %v108 = vunpack.c.l.bf16 %v106
  %v109 = vunpack.c.l.bf16 %v107
  %s110 = scalar_lea.vmem %s86, 16
  %v111 = vld [vmem:[%s110] sm:$0xf]
  %v112 = vld [vmem:[%s110 + $0x4] sm:$0xf]
  %v113 = vunpack.c.l.bf16 %v111
  %v114 = vunpack.c.l.bf16 %v112
  %s115 = sadd.s32 0, 0
  %s116 = smul.u32 %s115, 3
  %s117 = sld [smem:[#allocation7 + %s116]]
  %s118 = sadd.s32 %s116, 1
  %s119 = sld [smem:[#allocation7 + %s118]]
  %s120 = sadd.s32 %s116, 2
  %s121 = sld [smem:[#allocation7 + %s120]]
  %v122 = vlaneseq
  %v123 = vshrl.u32 %v122, 7
  %v124 = vadd.s32 %v123, 8
  %v125 = vmul.u32 %v123, 128
  %v126 = vmul.u32 %v124, 128
  %v127 = vlaneseq
  %v128 = vand.u32 %v127, 127
  %v129 = vadd.s32 %v125, %v128
  %v130 = vadd.s32 %v126, %v128
  %v131 = vstv %s117
  %v132 = vadd.s32 %v131, %v129
  %v133 = vadd.s32 %v131, %v130
  %v134 = vcvt.s32.f32 %v132
  %v135 = vcvt.s32.f32 %v133
  %v136 = vadd.f32 %v134, 0.5
  %v137 = vadd.f32 %v135, 0.5
  %v138 = vmul.f32 %v136, 0.125
  %v139 = vmul.f32 %v137, 0.125
  %v140 = vfloor.f32 %v138
  %v141 = vfloor.f32 %v139
  %v142 = vmul.f32 %v140, 8.0
  %v143 = vmul.f32 %v141, 8.0
  %v144 = vsub.f32 %v134, %v142
  %v145 = vsub.f32 %v135, %v143
  %s146 = scvt.s32.f32 %s119
  %v147 = vstv %s146
  %v148 = vadd.f32 %v147, %v140
  %v149 = vadd.f32 %v147, %v141
  %v150 = vadd.f32 %v148, 0.5
  %v151 = vadd.f32 %v149, 0.5
  %v152 = vmul.f32 %v150, 0.125
  %v153 = vmul.f32 %v151, 0.125
  %v154 = vfloor.f32 %v152
  %v155 = vfloor.f32 %v153
  %v156 = vmul.f32 %v154, 8.0
  %v157 = vmul.f32 %v155, 8.0
  %v158 = vsub.f32 %v148, %v156
  %v159 = vsub.f32 %v149, %v157
  %s160 = scvt.s32.f32 %s121
  %v161 = vstv %s160
  %v162 = vadd.f32 %v161, %v154
  %v163 = vadd.f32 %v161, %v155
  %v164 = vadd.f32 %v162, 0.5
  %v165 = vadd.f32 %v163, 0.5
  %v166 = vmul.f32 %v164, 0.33333334
  %v167 = vmul.f32 %v165, 0.33333334
  %v168 = vfloor.f32 %v166
  %v169 = vfloor.f32 %v167
  %v170 = vmul.f32 %v168, 3.0
  %v171 = vmul.f32 %v169, 3.0
  %v172 = vsub.f32 %v162, %v170
  %v173 = vsub.f32 %v163, %v171
  %vm174 = vcmp.eq.f32.partialorder %v172, 1.0
  %vm175 = vcmp.eq.f32.partialorder %v173, 1.0
  %v176 = vsel %vm174, 0.33333334, 0.6666667
  %v177 = vsel %vm175, 0.33333334, 0.6666667
  %v178 = vsel %vm174, 0.2857143, 0.5
  %v179 = vsel %vm175, 0.2857143, 0.5
  %vm180 = vcmp.eq.f32.partialorder %v172, 2.0
  %vm181 = vcmp.eq.f32.partialorder %v173, 2.0
  %v182 = vsel %vm180, 0.2, %v176
  %v183 = vsel %vm181, 0.2, %v177
  %v184 = vsel %vm180, 0.22222222, %v178
  %v185 = vsel %vm181, 0.22222222, %v179
  %v186 = vld [vmem:[%s70] sm:$0xff]
  %v187 = vld [vmem:[%s70 + $0x8] sm:$0xff]
  %v188 = vmul.f32 %v186, 8.0
  %v189 = vmul.f32 %v187, 8.0
  %v190 = vsub.f32 %v188, %v144
  %v191 = vsub.f32 %v189, %v145
  %v192 = vmax.f32 %v190, 1e-05
  %v193 = vmax.f32 %v191, 1e-05
  %v194 = vmin.f32 %v192, 0.99999
  %v195 = vmin.f32 %v193, 0.99999
  %v196 = vsub.f32 1.0, %v194
  %v197 = vsub.f32 1.0, %v195
  %v198 = vrcp.pop %v196
  %v199 = vrcp.pop %v197
  %v200 = vmul.f32 %v194, %v198
  %v201 = vmul.f32 %v195, %v199
  %v202 = vadd.f32 %v200, 1e-05
  %v203 = vadd.f32 %v201, 1e-05
  %v204 = vlog2.pop %v202
  %v205 = vmul.f32 %v204, 0.6931472
  %v206 = vlog2.pop %v203
  %v207 = vmul.f32 %v206, 0.6931472
  %s208 = scalar_lea.vmem %s70, 16
  %v209 = vld [vmem:[%s208] sm:$0xff]
  %v210 = vld [vmem:[%s208 + $0x8] sm:$0xff]
  %v211 = vmul.f32 %v209, 8.0
  %v212 = vmul.f32 %v210, 8.0
  %v213 = vsub.f32 %v211, %v158
  %v214 = vsub.f32 %v212, %v159
  %v215 = vmax.f32 %v213, 1e-05
  %v216 = vmax.f32 %v214, 1e-05
  %v217 = vmin.f32 %v215, 0.99999
  %v218 = vmin.f32 %v216, 0.99999
  %v219 = vsub.f32 1.0, %v217
  %v220 = vsub.f32 1.0, %v218
  %v221 = vrcp.pop %v219
  %v222 = vrcp.pop %v220
  %v223 = vmul.f32 %v217, %v221
  %v224 = vmul.f32 %v218, %v222
  %v225 = vadd.f32 %v223, 1e-05
  %v226 = vadd.f32 %v224, 1e-05
  %v227 = vlog2.pop %v225
  %v228 = vmul.f32 %v227, 0.6931472
  %v229 = vlog2.pop %v226
  %v230 = vmul.f32 %v229, 0.6931472
  %s231 = scalar_lea.vmem %s70, 32
  %v232 = vld [vmem:[%s231] sm:$0xff]
  %v233 = vld [vmem:[%s231 + $0x8] sm:$0xff]
  %v234 = vmul.f32 %v232, 8.0
  %v235 = vmul.f32 %v233, 8.0
  %v236 = vmul.f32 %v234, %v182
  %v237 = vmul.f32 %v235, %v183
  %v238 = vmax.f32 %v236, 1e-05
  %v239 = vmax.f32 %v237, 1e-05
  %v240 = vlog2.pop %v238
  %v241 = vmul.f32 %v240, 0.6931472
  %v242 = vlog2.pop %v239
  %v243 = vmul.f32 %v242, 0.6931472
  %s244 = scalar_lea.vmem %s70, 48
  %v245 = vld [vmem:[%s244] sm:$0xff]
  %v246 = vld [vmem:[%s244 + $0x8] sm:$0xff]
  %v247 = vmul.f32 %v245, 8.0
  %v248 = vmul.f32 %v246, 8.0
  %v249 = vmul.f32 %v247, %v184
  %v250 = vmul.f32 %v248, %v185
  %v251 = vmax.f32 %v249, 1e-05
  %v252 = vmax.f32 %v250, 1e-05
  %v253 = vlog2.pop %v251
  %v254 = vmul.f32 %v253, 0.6931472
  %v255 = vlog2.pop %v252
  %v256 = vmul.f32 %v255, 0.6931472
  %v257 = vld [vmem:[%s78] sm:$0xff]
  %v258 = vld [vmem:[%s78 + $0x8] sm:$0xff]
  %v259 = vsub.f32 %v205, %v257
  %v260 = vsub.f32 %v207, %v258
  %v261 = vmul.f32 %v259, %v259
  %v262 = vmul.f32 %v260, %v260
  %s263 = scalar_lea.vmem %s78, 16
  %v264 = vld [vmem:[%s263] sm:$0xff]
  %v265 = vld [vmem:[%s263 + $0x8] sm:$0xff]
  %v266 = vsub.f32 %v228, %v264
  %v267 = vsub.f32 %v230, %v265
  %v268 = vmul.f32 %v266, %v266
  %v269 = vmul.f32 %v267, %v267
  %v270 = vadd.f32 %v261, %v268
  %v271 = vadd.f32 %v262, %v269
  %s272 = scalar_lea.vmem %s78, 32
  %v273 = vld [vmem:[%s272] sm:$0xff]
  %v274 = vld [vmem:[%s272 + $0x8] sm:$0xff]
  %v275 = vsub.f32 %v241, %v273
  %v276 = vsub.f32 %v243, %v274
  %v277 = vmul.f32 %v275, %v275
  %v278 = vmul.f32 %v276, %v276
  %v279 = vadd.f32 %v270, %v277
  %v280 = vadd.f32 %v271, %v278
  %s281 = scalar_lea.vmem %s78, 48
  %v282 = vld [vmem:[%s281] sm:$0xff]
  %v283 = vld [vmem:[%s281 + $0x8] sm:$0xff]
  %v284 = vsub.f32 %v254, %v282
  %v285 = vsub.f32 %v256, %v283
  %v286 = vmul.f32 %v284, %v284
  %v287 = vmul.f32 %v285, %v285
  %v288 = vadd.f32 %v279, %v286
  %v289 = vadd.f32 %v280, %v287
  %v290 = vld [vmem:[#allocation2] sm:$0xff]
  %v291 = vld [vmem:[#allocation2 + $0x8] sm:$0xff]
  %v292 = vmul.f32 %v103, %v288
  %v293 = vmul.f32 %v104, %v289
  %v294 = vadd.f32 %v290, %v292
  %v295 = vadd.f32 %v291, %v293
  %296 = vst [vmem:[#allocation2] sm:$0xff] %v294
  %297 = vst [vmem:[#allocation2 + $0x8] sm:$0xff] %v295
  %s298 = scalar_lea.vmem %s70, 64
  %v299 = vld [vmem:[%s298] sm:$0xff]
  %v300 = vld [vmem:[%s298 + $0x8] sm:$0xff]
  %v301 = vld [vmem:[#allocation3] sm:$0xff]
  %v302 = vld [vmem:[#allocation3 + $0x8] sm:$0xff]
  %v303 = vlog2.pop %v299
  %v304 = vmul.f32 %v303, 0.6931472
  %v305 = vlog2.pop %v300
  %v306 = vmul.f32 %v305, 0.6931472
  %v307 = vsub.f32 0.0, %v304
  %v308 = vsub.f32 0.0, %v306
  %v309 = vmin.f32 %v307, 100.0
  %v310 = vmin.f32 %v308, 100.0
  %v311 = vmul.f32 %v103, %v309
  %v312 = vmul.f32 %v104, %v310
  %v313 = vadd.f32 %v301, %v311
  %v314 = vadd.f32 %v302, %v312
  %315 = vst [vmem:[#allocation3] sm:$0xff] %v313
  %316 = vst [vmem:[#allocation3 + $0x8] sm:$0xff] %v314
  %v317 = vld [vmem:[#allocation4] sm:$0xff]
  %v318 = vld [vmem:[#allocation4 + $0x8] sm:$0xff]
  %v319 = vsub.f32 1.0, %v299
  %v320 = vsub.f32 1.0, %v300
  %v321 = vlog2.pop %v319
  %v322 = vmul.f32 %v321, 0.6931472
  %v323 = vlog2.pop %v320
  %v324 = vmul.f32 %v323, 0.6931472
  %v325 = vsub.f32 0.0, %v322
  %v326 = vsub.f32 0.0, %v324
  %v327 = vmin.f32 %v325, 100.0
  %v328 = vmin.f32 %v326, 100.0
  %v329 = vmul.f32 %v108, %v327
  %v330 = vmul.f32 %v109, %v328
  %v331 = vadd.f32 %v317, %v329
  %v332 = vadd.f32 %v318, %v330
  %333 = vst [vmem:[#allocation4] sm:$0xff] %v331
  %334 = vst [vmem:[#allocation4 + $0x8] sm:$0xff] %v332
  %vm335 = vcmp.eq.f32.partialorder %v113, 0.0
  %vm336 = vcmp.eq.f32.partialorder %v114, 0.0
  %v337 = vsel %vm335, 1, 0
  %v338 = vsel %vm336, 1, 0
  %v339 = vcvt.s32.f32 %v337
  %v340 = vcvt.s32.f32 %v338
  %s341 = scalar_lea.vmem %s70, 80
  %v342 = vld [vmem:[%s341] sm:$0xff]
  %v343 = vld [vmem:[%s341 + $0x8] sm:$0xff]
  %v344 = vlog2.pop %v342
  %v345 = vmul.f32 %v344, 0.6931472
  %v346 = vlog2.pop %v343
  %v347 = vmul.f32 %v346, 0.6931472
  %v348 = vmax.f32 %v345, -100.0
  %v349 = vmax.f32 %v347, -100.0
  %v350 = vsub.f32 1.0, %v342
  %v351 = vsub.f32 1.0, %v343
  %v352 = vlog2.pop %v350
  %v353 = vmul.f32 %v352, 0.6931472
  %v354 = vlog2.pop %v351
  %v355 = vmul.f32 %v354, 0.6931472
  %v356 = vmax.f32 %v353, -100.0
  %v357 = vmax.f32 %v355, -100.0
  %v358 = vsub.f32 %v356, %v348
  %v359 = vsub.f32 %v357, %v349
  %v360 = vmul.f32 %v339, %v358
  %v361 = vmul.f32 %v340, %v359
  %v362 = vsub.f32 %v360, %v356
  %v363 = vsub.f32 %v361, %v357
  %v364 = vadd.f32 %v362, 0.0
  %v365 = vadd.f32 %v363, 0.0
  %vm366 = vcmp.eq.f32.partialorder %v113, 1.0
  %vm367 = vcmp.eq.f32.partialorder %v114, 1.0
  %v368 = vsel %vm366, 1, 0
  %v369 = vsel %vm367, 1, 0
  %v370 = vcvt.s32.f32 %v368
  %v371 = vcvt.s32.f32 %v369
  %s372 = scalar_lea.vmem %s70, 96
  %v373 = vld [vmem:[%s372] sm:$0xff]
  %v374 = vld [vmem:[%s372 + $0x8] sm:$0xff]
  %v375 = vlog2.pop %v373
  %v376 = vmul.f32 %v375, 0.6931472
  %v377 = vlog2.pop %v374
  %v378 = vmul.f32 %v377, 0.6931472
  %v379 = vmax.f32 %v376, -100.0
  %v380 = vmax.f32 %v378, -100.0
  %v381 = vsub.f32 1.0, %v373
  %v382 = vsub.f32 1.0, %v374
  %v383 = vlog2.pop %v381
  %v384 = vmul.f32 %v383, 0.6931472
  %v385 = vlog2.pop %v382
  %v386 = vmul.f32 %v385, 0.6931472
  %v387 = vmax.f32 %v384, -100.0
  %v388 = vmax.f32 %v386, -100.0
  %v389 = vsub.f32 %v387, %v379
  %v390 = vsub.f32 %v388, %v380
  %v391 = vmul.f32 %v370, %v389
  %v392 = vmul.f32 %v371, %v390
  %v393 = vsub.f32 %v391, %v387
  %v394 = vsub.f32 %v392, %v388
  %v395 = vadd.f32 %v364, %v393
  %v396 = vadd.f32 %v365, %v394
  %vm397 = vcmp.eq.f32.partialorder %v113, 2.0
  %vm398 = vcmp.eq.f32.partialorder %v114, 2.0
  %v399 = vsel %vm397, 1, 0
  %v400 = vsel %vm398, 1, 0
  %v401 = vcvt.s32.f32 %v399
  %v402 = vcvt.s32.f32 %v400
  %s403 = scalar_lea.vmem %s70, 112
  %v404 = vld [vmem:[%s403] sm:$0xff]
  %v405 = vld [vmem:[%s403 + $0x8] sm:$0xff]
  %v406 = vlog2.pop %v404
  %v407 = vmul.f32 %v406, 0.6931472
  %v408 = vlog2.pop %v405
  %v409 = vmul.f32 %v408, 0.6931472
  %v410 = vmax.f32 %v407, -100.0
  %v411 = vmax.f32 %v409, -100.0
  %v412 = vsub.f32 1.0, %v404
  %v413 = vsub.f32 1.0, %v405
  %v414 = vlog2.pop %v412
  %v415 = vmul.f32 %v414, 0.6931472
  %v416 = vlog2.pop %v413
  %v417 = vmul.f32 %v416, 0.6931472
  %v418 = vmax.f32 %v415, -100.0
  %v419 = vmax.f32 %v417, -100.0
  %v420 = vsub.f32 %v418, %v410
  %v421 = vsub.f32 %v419, %v411
  %v422 = vmul.f32 %v401, %v420
  %v423 = vmul.f32 %v402, %v421
  %v424 = vsub.f32 %v422, %v418
  %v425 = vsub.f32 %v423, %v419
  %v426 = vadd.f32 %v395, %v424
  %v427 = vadd.f32 %v396, %v425
  %vm428 = vcmp.eq.f32.partialorder %v113, 3.0
  %vm429 = vcmp.eq.f32.partialorder %v114, 3.0
  %v430 = vsel %vm428, 1, 0
  %v431 = vsel %vm429, 1, 0
  %v432 = vcvt.s32.f32 %v430
  %v433 = vcvt.s32.f32 %v431
  %s434 = scalar_lea.vmem %s70, 128
  %v435 = vld [vmem:[%s434] sm:$0xff]
  %v436 = vld [vmem:[%s434 + $0x8] sm:$0xff]
  %v437 = vlog2.pop %v435
  %v438 = vmul.f32 %v437, 0.6931472
  %v439 = vlog2.pop %v436
  %v440 = vmul.f32 %v439, 0.6931472
  %v441 = vmax.f32 %v438, -100.0
  %v442 = vmax.f32 %v440, -100.0
  %v443 = vsub.f32 1.0, %v435
  %v444 = vsub.f32 1.0, %v436
  %v445 = vlog2.pop %v443
  %v446 = vmul.f32 %v445, 0.6931472
  %v447 = vlog2.pop %v444
  %v448 = vmul.f32 %v447, 0.6931472
  %v449 = vmax.f32 %v446, -100.0
  %v450 = vmax.f32 %v448, -100.0
  %v451 = vsub.f32 %v449, %v441
  %v452 = vsub.f32 %v450, %v442
  %v453 = vmul.f32 %v432, %v451
  %v454 = vmul.f32 %v433, %v452
  %v455 = vsub.f32 %v453, %v449
  %v456 = vsub.f32 %v454, %v450
  %v457 = vadd.f32 %v426, %v455
  %v458 = vadd.f32 %v427, %v456
  %v459 = vld [vmem:[#allocation5] sm:$0xff]
  %v460 = vld [vmem:[#allocation5 + $0x8] sm:$0xff]
  %v461 = vmul.f32 %v103, %v457
  %v462 = vmul.f32 %v104, %v458
  %v463 = vadd.f32 %v459, %v461
  %v464 = vadd.f32 %v460, %v462
  %465 = vst [vmem:[#allocation5] sm:$0xff] %v463
  %466 = vst [vmem:[#allocation5 + $0x8] sm:$0xff] %v464
  // Predicated region
  $region18: #{_lambda_.2} parent=0 // pred_check
    %p467 = pneg %p89
  $region19: #{_lambda_.2} parent=0 // pred_check_branch
    %469 = sbr.rel (%p467) target = $region21
  $region20: #{_lambda_.2} parent=0 // pred_region
    %vm470 = vcmp.eq.s32.totalorder %v123, 0
    %v471 = vld [vmem:[#allocation2] sm:$0xff]
    %v472 = vld [vmem:[#allocation2 + $0x8] sm:$0xff]
    %v473 = vadd.f32 %v471, %v472
    %v474 = vrot.slane %v473, 4
    %v475 = vadd.f32 %v473, %v474
    %v476 = vrot.slane %v475, 2
    %v477 = vadd.f32 %v475, %v476
    %v478 = vrot.slane %v477, 1
    %v479 = vadd.f32 %v477, %v478
    %v480 = vsel %vm470, %v479, 0.0
    %vm481 = vcmp.eq.s32.totalorder %v123, 1
    %v482 = vld [vmem:[#allocation3] sm:$0xff]
    %v483 = vld [vmem:[#allocation3 + $0x8] sm:$0xff]
    %v484 = vadd.f32 %v482, %v483
    %v485 = vrot.slane %v484, 4
    %v486 = vadd.f32 %v484, %v485
    %v487 = vrot.slane %v486, 2
    %v488 = vadd.f32 %v486, %v487
    %v489 = vrot.slane %v488, 1
    %v490 = vadd.f32 %v488, %v489
    %v491 = vsel %vm481, %v490, %v480
    %vm492 = vcmp.eq.s32.totalorder %v123, 2
    %v493 = vld [vmem:[#allocation4] sm:$0xff]
    %v494 = vld [vmem:[#allocation4 + $0x8] sm:$0xff]
    %v495 = vadd.f32 %v493, %v494
    %v496 = vrot.slane %v495, 4
    %v497 = vadd.f32 %v495, %v496
    %v498 = vrot.slane %v497, 2
    %v499 = vadd.f32 %v497, %v498
    %v500 = vrot.slane %v499, 1
    %v501 = vadd.f32 %v499, %v500
    %v502 = vsel %vm492, %v501, %v491
    %vm503 = vcmp.eq.s32.totalorder %v123, 3
    %v504 = vld [vmem:[#allocation5] sm:$0xff]
    %v505 = vld [vmem:[#allocation5 + $0x8] sm:$0xff]
    %v506 = vadd.f32 %v504, %v505
    %v507 = vrot.slane %v506, 4
    %v508 = vadd.f32 %v506, %v507
    %v509 = vrot.slane %v508, 2
    %v510 = vadd.f32 %v508, %v509
    %v511 = vrot.slane %v510, 1
    %v512 = vadd.f32 %v510, %v511
    %v513 = vsel %vm503, %v512, %v502
    %514 = vst [vmem:[%s4] sm:$0xff] %v513
  $region21: #{_lambda_.2} parent=0 // pred_fallthru
    _
  // Predicated region
  $region22: #{_lambda_.2} parent=0 // pred_check
    _
  $region23: #{_lambda_.2} parent=0 // pred_check_branch
    %516 = sbr.rel (0) target = $region25
  $region24: #{_lambda_.2} parent=0 // pred_region
    _
  $region25: #{_lambda_.2} parent=0 // pred_fallthru
    _
  // Predicated region
  $region26: #{_lambda_.2} parent=0 // pred_check
    _
  $region27: #{_lambda_.2} parent=0 // pred_check_branch
    %518 = sbr.rel (0) target = $region29
  $region28: #{_lambda_.2} parent=0 // pred_region
    _
  $region29: #{_lambda_.2} parent=0 // pred_fallthru
    _

</llo_original>
